<compile_context>
chip_gen: v7x
topology: tpu7x:2x2x1
jax: 0.10.0
libtpu: 0.0.40
codegen_flags: <defaults>
</compile_context>

<pallas_src>
import functools

import jax
import jax.numpy as jnp
from jax import lax
from jax.experimental import pallas as pl
from jax.experimental.pallas import tpu as pltpu

_MIB = 1024 * 1024
_HI = jax.lax.Precision.HIGHEST


# ---------------------------------------------------------------------------
# Kernels
# ---------------------------------------------------------------------------
def _gn3d_kernel(x_ref, gamma_ref, beta_ref, oh_ref, o_ref, *, eps,
                 groups_per_block, count):
    """Single-slab GroupNorm: block = (1, L, CT), CT = groups_per_block*Cg."""
    x = x_ref[0].astype(jnp.float32)                      # (L, CT)
    n = jnp.float32(count)                                # elems per group

    s = jnp.sum(x, axis=0, keepdims=True)                 # (1, CT)
    if groups_per_block == 1:
        mean_c = jnp.sum(s, axis=1, keepdims=True) / n    # (1, 1), broadcasts
    else:
        oh = oh_ref[...]                                  # (CT, k) f32 0/1
        mean_g = jnp.dot(s, oh, precision=_HI,
                         preferred_element_type=jnp.float32) / n      # (1, k)
        mean_c = lax.dot_general(mean_g, oh, (((1,), (1,)), ((), ())),
                                 precision=_HI,
                                 preferred_element_type=jnp.float32)  # (1, CT)

    xc = x - mean_c                                       # centered pass
    ssc = jnp.sum(xc * xc, axis=0, keepdims=True)         # (1, CT)
    if groups_per_block == 1:
        var = jnp.sum(ssc, axis=1, keepdims=True) / n
        inv_c = lax.rsqrt(var + jnp.float32(eps))
    else:
        var_g = jnp.dot(ssc, oh, precision=_HI,
                        preferred_element_type=jnp.float32) / n
        inv_g = lax.rsqrt(var_g + jnp.float32(eps))
        inv_c = lax.dot_general(inv_g, oh, (((1,), (1,)), ((), ())),
                                precision=_HI,
                                preferred_element_type=jnp.float32)

    a = inv_c * gamma_ref[...].astype(jnp.float32)        # per-channel scale
    # y = (x - mean) * a + beta, from the centered xc (x no longer live).
    o_ref[0] = (xc * a + beta_ref[...].astype(jnp.float32)).astype(o_ref.dtype)


def _gn2d_kernel(x_ref, gamma_ref, beta_ref, oh_ref, o_ref, *, eps,
                 group_size):
    """2D GroupNorm: block = (TB, C); group reduce/broadcast via one-hot."""
    x = x_ref[...].astype(jnp.float32)                    # (TB, C)
    n = jnp.float32(group_size)
    oh = oh_ref[...]                                      # (C, G) f32 0/1

    mean_g = jnp.dot(x, oh, precision=_HI,
                     preferred_element_type=jnp.float32) / n          # (TB, G)
    mean_c = lax.dot_general(mean_g, oh, (((1,), (1,)), ((), ())),
                             precision=_HI,
                             preferred_element_type=jnp.float32)      # (TB, C)
    xc = x - mean_c
    var_g = jnp.dot(xc * xc, oh, precision=_HI,
                    preferred_element_type=jnp.float32) / n
    inv_g = lax.rsqrt(var_g + jnp.float32(eps))
    inv_c = lax.dot_general(inv_g, oh, (((1,), (1,)), ((), ())),
                            precision=_HI,
                            preferred_element_type=jnp.float32)       # (TB, C)

    a = inv_c * gamma_ref[...].astype(jnp.float32)
    o_ref[...] = (xc * a + beta_ref[...].astype(jnp.float32)).astype(o_ref.dtype)


def _gn3d_stats_kernel(x_ref, sum_ref, ssq_ref, *, l_size, tl):
    """Accumulate per-channel sum / sum-of-squares over the arbitrary L axis."""
    l = pl.program_id(2)
    x = x_ref[0].astype(jnp.float32)                      # (TL, ct)
    if l_size % tl:
        # Last L block is partial: zero the rows that lie past the end of L.
        valid = l_size - l * tl
        row = lax.broadcasted_iota(jnp.int32, x.shape, 0)
        x = jnp.where(row < valid, x, 0.0)
    s = jnp.sum(x, axis=0, keepdims=True)                 # (1, ct)
    ss = jnp.sum(x * x, axis=0, keepdims=True)            # (1, ct)

    @pl.when(l == 0)
    def _():
        sum_ref[0] = s
        ssq_ref[0] = ss

    @pl.when(l > 0)
    def _():
        sum_ref[0] += s
        ssq_ref[0] += ss


def _gn3d_norm_kernel(x_ref, mean_ref, inv_ref, gamma_ref, beta_ref, o_ref):
    """Normalize pass of the two-pass (large-L) path."""
    x = x_ref[0].astype(jnp.float32)                      # (TL, ct)
    a = inv_ref[0] * gamma_ref[...].astype(jnp.float32)   # (1, ct)
    b = beta_ref[...].astype(jnp.float32) - mean_ref[0] * a
    o_ref[0] = (x * a + b).astype(o_ref.dtype)


# ---------------------------------------------------------------------------
# Tiling helpers
# ---------------------------------------------------------------------------
def _vmem_params():
    """Generation-aware (vmem_limit_bytes, per-f32-block byte budget).

    Peak live VMEM ~= 2x(in block) + 2x(out block) + ~2 block-sized f32 temps
    ~= 6x one f32 block, so the per-block budget is kept well under
    vmem_limit / 6 on every generation."""
    try:
        cap = int(pltpu.get_tpu_info().vmem_capacity_bytes)
    except Exception:  # be conservative if the query is unavailable
        cap = 64 * _MIB
    if cap >= 96 * _MIB:            # v5e / v6e: 128 MiB VMEM per TensorCore
        return 96 * _MIB, 12 * _MIB
    return 48 * _MIB, 5 * _MIB      # v7x: 64 MiB VMEM per TensorCore


def _one_hot_cg(ct, group_size):
    """(ct, k) f32 one-hot: column g is 1 for channels belonging to group g."""
    k = ct // group_size
    ch_group = jnp.arange(ct, dtype=jnp.int32)[:, None] // group_size
    grp = jnp.arange(k, dtype=jnp.int32)[None, :]
    return (ch_group == grp).astype(jnp.float32)


def _channel_tile_candidates(C, group_size):
    num_groups = C // group_size
    cands = []
    for k in range(1, num_groups + 1):
        ct = k * group_size
        if C % ct:
            continue
        if ct % 128 != 0 and ct != C:      # lane-dense or full-C only
            continue
        cands.append(ct)
    return cands


def _choose_channel_tile(B, L, C, group_size, block_budget):
    """Largest whole-group, lane-dense channel tile whose (L, ct) f32 slab
    fits the per-block budget; None if even the smallest does not fit."""
    cands = _channel_tile_candidates(C, group_size)
    fitting = [ct for ct in cands if L * ct * 4 <= block_budget]
    if not fitting:
        return None
    if B == 1:
        # v7x megacore: keep >= 2 "parallel" grid steps so the second
        # TensorCore has work (near-free on single-TC v5e/v6e parts).
        split = [ct for ct in fitting if C // ct >= 2]
        if split:
            return max(split)
    return max(fitting)


def _choose_fallback_tiles(L, C, group_size, block_budget):
    """(ct, tl) for the L-tiled two-pass path."""
    cands = _channel_tile_candidates(C, group_size)
    fitting = [ct for ct in cands if 8 * ct * 4 <= block_budget]
    ct = max(fitting) if fitting else min(cands)
    tl = max(8, (block_budget // (ct * 4)) // 8 * 8)
    tl = min(tl, max(8, (L // 8) * 8))
    return ct, tl


# ---------------------------------------------------------------------------
# pallas_call wrappers
# ---------------------------------------------------------------------------
def _gn3d_single_pass(x, gamma, beta, num_groups, eps, *, ct, vmem_limit):
    B, L, C = x.shape
    Cg = C // num_groups
    k = ct // Cg
    oh = _one_hot_cg(ct, Cg)                   # built once, hoisted out of kernel
    kernel = functools.partial(_gn3d_kernel, eps=eps, groups_per_block=k,
                               count=float(L * Cg))
    return pl.pallas_call(
        kernel,
        out_shape=jax.ShapeDtypeStruct((B, L, C), x.dtype),
        grid=(B, C // ct),
        in_specs=[
            pl.BlockSpec((1, L, ct), lambda b, c: (b, 0, c)),
            pl.BlockSpec((1, ct), lambda b, c: (0, c)),
            pl.BlockSpec((1, ct), lambda b, c: (0, c)),
            pl.BlockSpec((ct, k), lambda b, c: (0, 0)),
        ],
        out_specs=pl.BlockSpec((1, L, ct), lambda b, c: (b, 0, c)),
        compiler_params=pltpu.CompilerParams(
            dimension_semantics=("parallel", "parallel"),
            vmem_limit_bytes=vmem_limit),
    )(x, gamma, beta, oh)


def _gn3d_two_pass(x, gamma, beta, num_groups, eps, *, ct, tl, vmem_limit):
    """L-tiled two-pass GroupNorm for [B, L, C] when a whole (L, ct) slab
    does not fit VMEM.  Pass 1 accumulates per-channel sum / sum-of-squares
    over L tiles, tiny per-group stats are finished in plain JAX (O(B*C)),
    pass 2 normalizes.  x is read twice from HBM (unavoidable once the
    sequence no longer fits on-chip)."""
    B, L, C = x.shape
    Cg = C // num_groups
    n_l = pl.cdiv(L, tl)
    n_c = C // ct

    stats_kernel = functools.partial(_gn3d_stats_kernel, l_size=L, tl=tl)
    sums, sumsqs = pl.pallas_call(
        stats_kernel,
        out_shape=(jax.ShapeDtypeStruct((B, 1, C), jnp.float32),
                   jax.ShapeDtypeStruct((B, 1, C), jnp.float32)),
        grid=(B, n_c, n_l),
        in_specs=[pl.BlockSpec((1, tl, ct), lambda b, c, l: (b, l, c))],
        out_specs=(pl.BlockSpec((1, 1, ct), lambda b, c, l: (b, 0, c)),
                   pl.BlockSpec((1, 1, ct), lambda b, c, l: (b, 0, c))),
        compiler_params=pltpu.CompilerParams(
            dimension_semantics=("parallel", "parallel", "arbitrary"),
            vmem_limit_bytes=vmem_limit),
    )(x)

    # Tiny per-group statistics in plain JAX (sum/sumsq formulation).
    cnt = jnp.float32(L * Cg)
    sum_g = sums.reshape(B, num_groups, Cg).sum(axis=2)
    ssq_g = sumsqs.reshape(B, num_groups, Cg).sum(axis=2)
    mean_g = sum_g / cnt
    var_g = jnp.maximum(ssq_g / cnt - mean_g * mean_g, 0.0)
    inv_g = lax.rsqrt(var_g + jnp.float32(eps))
    mean_c = jnp.repeat(mean_g, Cg, axis=1).reshape(B, 1, C)
    inv_c = jnp.repeat(inv_g, Cg, axis=1).reshape(B, 1, C)

    return pl.pallas_call(
        _gn3d_norm_kernel,
        out_shape=jax.ShapeDtypeStruct((B, L, C), x.dtype),
        grid=(B, n_l, n_c),
        in_specs=[
            pl.BlockSpec((1, tl, ct), lambda b, l, c: (b, l, c)),
            pl.BlockSpec((1, 1, ct), lambda b, l, c: (b, 0, c)),
            pl.BlockSpec((1, 1, ct), lambda b, l, c: (b, 0, c)),
            pl.BlockSpec((1, ct), lambda b, l, c: (0, c)),
            pl.BlockSpec((1, ct), lambda b, l, c: (0, c)),
        ],
        out_specs=pl.BlockSpec((1, tl, ct), lambda b, l, c: (b, l, c)),
        compiler_params=pltpu.CompilerParams(
            dimension_semantics=("parallel", "parallel", "parallel"),
            vmem_limit_bytes=vmem_limit),
    )(x, mean_c, inv_c, gamma, beta)


def group_norm_1d(x, weight, bias, num_groups, eps=1e-5):
    """Forward of GroupNorm1d. x: [B, L, C] (channels last) or [B, C]."""
    assert x.ndim in (2, 3)
    C = x.shape[-1]
    G = num_groups
    assert C % G == 0
    Cg = C // G

    gamma = weight.reshape(1, C).astype(jnp.float32)
    beta = bias.reshape(1, C).astype(jnp.float32)
    vmem_limit, block_budget = _vmem_params()

    if x.ndim == 3:
        B, L, _ = x.shape
        ct = _choose_channel_tile(B, L, C, Cg, block_budget)
        if ct is not None:
            return _gn3d_single_pass(x, gamma, beta, G, eps, ct=ct,
                                     vmem_limit=vmem_limit)
        # Very large L: whole-L slab would blow VMEM -> L-tiled two-pass.
        ct, tl = _choose_fallback_tiles(L, C, Cg, block_budget)
        return _gn3d_two_pass(x, gamma, beta, G, eps, ct=ct, tl=tl,
                              vmem_limit=vmem_limit)

    # 2D [B, C]: VMEM-budgeted row tile (~2 block-sized f32 temps live
    # in-kernel on top of the double-buffered in/out blocks).
    B = x.shape[0]
    tb = block_budget // (C * 4 * 2)
    tb = max(8, (tb // 8) * 8)
    TB = B if B <= tb else tb
    oh = _one_hot_cg(C, Cg)                    # (C, G), hoisted out of kernel
    kernel = functools.partial(_gn2d_kernel, eps=eps, group_size=Cg)
    return pl.pallas_call(
        kernel,
        out_shape=jax.ShapeDtypeStruct((B, C), x.dtype),
        grid=(pl.cdiv(B, TB),),
        in_specs=[
            pl.BlockSpec((TB, C), lambda i: (i, 0)),
            pl.BlockSpec((1, C), lambda i: (0, 0)),
            pl.BlockSpec((1, C), lambda i: (0, 0)),
            pl.BlockSpec((C, G), lambda i: (0, 0)),
        ],
        out_specs=pl.BlockSpec((TB, C), lambda i: (i, 0)),
        compiler_params=pltpu.CompilerParams(
            dimension_semantics=("parallel",),
            vmem_limit_bytes=vmem_limit),
    )(x, gamma, beta, oh)


# ---------------------------------------------------------------------------
# Pure-JAX reference (matches torch.nn.GroupNorm applied after the permute)
# ---------------------------------------------------------------------------
def _reference_group_norm(x, weight, bias, num_groups, eps=1e-5):
    orig_ndim = x.ndim
    if x.ndim == 2:
        x = x[:, None, :]
    B, L, C = x.shape
    Cg = C // num_groups
    xg = x.reshape(B, L, num_groups, Cg).astype(jnp.float32)
    mean = xg.mean(axis=(1, 3), keepdims=True)
    var = xg.var(axis=(1, 3), keepdims=True)
    y = (xg - mean) / jnp.sqrt(var + eps)
    y = y.reshape(B, L, C) * weight.reshape(1, 1, C) + bias.reshape(1, 1, C)
    y = y.astype(x.dtype)
    if orig_ndim == 2:
        y = y[:, 0, :]
    return y


if __name__ == "__main__":
    key = jax.random.PRNGKey(0)
    k1, k2, k3 = jax.random.split(key, 3)

    B, L, C, G = 2, 8, 32, 4

    # Deterministic non-trivial affine parameters for nn.GroupNorm(G, C).
    weight = 1.0 + 0.1 * jnp.arange(C, dtype=jnp.float32)
    bias = 0.01 * jnp.arange(C, dtype=jnp.float32)

    # 3D case: [B, L, C] (single-slab fast path).
    x3 = jax.random.normal(k1, (B, L, C), dtype=jnp.float32)
    y3 = jax.block_until_ready(group_norm_1d(x3, weight, bias, num_groups=G))
    ref3 = _reference_group_norm(x3, weight, bias, num_groups=G)
    assert jnp.allclose(y3, ref3, atol=1e-5, rtol=1e-5), "3D mismatch"

    # 2D case: [B, C].
    x2 = jax.random.normal(k2, (B, C), dtype=jnp.float32)
    y2 = jax.block_until_ready(group_norm_1d(x2, weight, bias, num_groups=G))
    ref2 = _reference_group_norm(x2, weight, bias, num_groups=G)
    assert jnp.allclose(y2, ref2, atol=1e-5, rtol=1e-5), "2D mismatch"

    # Exercise the L-tiled two-pass fallback (normally only for very large L)
    # with small forced tiles so the accumulator path is validated too.
    Lb = 24
    x3b = jax.random.normal(k3, (B, Lb, C), dtype=jnp.float32)
    y3b = jax.block_until_ready(
        _gn3d_two_pass(x3b, weight.reshape(1, C), bias.reshape(1, C),
                       num_groups=G, eps=1e-5, ct=C, tl=8,
                       vmem_limit=_vmem_params()[0]))
    ref3b = _reference_group_norm(x3b, weight, bias, num_groups=G)
    assert jnp.allclose(y3b, ref3b, atol=1e-4, rtol=1e-4), "two-pass mismatch"

    print("KERNEL_OK")
</pallas_src>

<mosaic_0001>
module attributes {stable_mosaic.version = 11 : i64} {
  func.func @_gn3d_kernel(%arg0: i32, %arg1: i32, %arg2: memref<1x8x32xf32, #tpu.memory_space<vmem>>, %arg3: memref<1x32xf32, #tpu.memory_space<vmem>>, %arg4: memref<1x32xf32, #tpu.memory_space<vmem>>, %arg5: memref<32x4xf32, #tpu.memory_space<vmem>>, %arg6: memref<1x8x32xf32, #tpu.memory_space<vmem>>) attributes {dimension_semantics = [#tpu.dimension_semantics<parallel>, #tpu.dimension_semantics<parallel>], iteration_bounds = array<i64: 2, 1>, scalar_prefetch = 0 : i64, scratch_operands = 0 : i64, tpu.core_type = #tpu.core_type<tc>, window_params = [{transform_indices = @transform_0, window_bounds = array<i64: 1, 8, 32>}, {transform_indices = @transform_1, window_bounds = array<i64: 1, 32>}, {transform_indices = @transform_2, window_bounds = array<i64: 1, 32>}, {pipeline_mode = #tpu.pipeline_mode<synchronous>, transform_indices = @transform_3, window_bounds = array<i64: 32, 4>}, {transform_indices = @transform_4, window_bounds = array<i64: 1, 8, 32>}]} {
    %c0 = arith.constant 0 : index
    %c0_0 = arith.constant 0 : index
    %c0_1 = arith.constant 0 : index
    %0 = vector.load %arg2[%c0, %c0_0, %c0_1] : memref<1x8x32xf32, #tpu.memory_space<vmem>>, vector<1x8x32xf32>
    %1 = vector.shape_cast %0 : vector<1x8x32xf32> to vector<8x32xf32>
    %cst = arith.constant dense<0.000000e+00> : vector<32xf32>
    %2 = vector.multi_reduction <add>, %1, %cst [0] : vector<8x32xf32> to vector<32xf32>
    %3 = vector.shape_cast %2 : vector<32xf32> to vector<1x32xf32>
    %c0_2 = arith.constant 0 : index
    %c0_3 = arith.constant 0 : index
    %4 = vector.load %arg5[%c0_2, %c0_3] : memref<32x4xf32, #tpu.memory_space<vmem>>, vector<32x4xf32>
    %cst_4 = arith.constant dense<0.000000e+00> : vector<1x4xf32>
    %5 = tpu.matmul %3, %4, %cst_4 {dimension_numbers = #tpu.dot_dimension_numbers<[1], [0], [0], [1], [0, 0, 1, 1], [], []>, precision = #tpu.contract_precision<fp32>} : vector<1x32xf32>, vector<32x4xf32>, vector<1x4xf32> -> vector<1x4xf32>
    %cst_5 = arith.constant 6.400000e+01 : f32
    %6 = vector.broadcast %cst_5 : f32 to vector<1x4xf32>
    %7 = arith.divf %5, %6 : vector<1x4xf32>
    %cst_6 = arith.constant dense<0.000000e+00> : vector<1x32xf32>
    %8 = tpu.matmul %7, %4, %cst_6 {dimension_numbers = #tpu.dot_dimension_numbers<[1], [1], [0], [0], [0, 0, 1, 0], [], []>, precision = #tpu.contract_precision<fp32>} : vector<1x4xf32>, vector<32x4xf32>, vector<1x32xf32> -> vector<1x32xf32>
    %9 = vector.broadcast %8 : vector<1x32xf32> to vector<8x32xf32>
    %10 = arith.subf %1, %9 : vector<8x32xf32>
    %11 = arith.mulf %10, %10 : vector<8x32xf32>
    %cst_7 = arith.constant dense<0.000000e+00> : vector<32xf32>
    %12 = vector.multi_reduction <add>, %11, %cst_7 [0] : vector<8x32xf32> to vector<32xf32>
    %13 = vector.shape_cast %12 : vector<32xf32> to vector<1x32xf32>
    %cst_8 = arith.constant dense<0.000000e+00> : vector<1x4xf32>
    %14 = tpu.matmul %13, %4, %cst_8 {dimension_numbers = #tpu.dot_dimension_numbers<[1], [0], [0], [1], [0, 0, 1, 1], [], []>, precision = #tpu.contract_precision<fp32>} : vector<1x32xf32>, vector<32x4xf32>, vector<1x4xf32> -> vector<1x4xf32>
    %cst_9 = arith.constant 6.400000e+01 : f32
    %15 = vector.broadcast %cst_9 : f32 to vector<1x4xf32>
    %16 = arith.divf %14, %15 : vector<1x4xf32>
    %cst_10 = arith.constant 9.99999974E-6 : f32
    %17 = vector.broadcast %cst_10 : f32 to vector<1x4xf32>
    %18 = arith.addf %16, %17 : vector<1x4xf32>
    %19 = math.rsqrt %18 : vector<1x4xf32>
    %cst_11 = arith.constant dense<0.000000e+00> : vector<1x32xf32>
    %20 = tpu.matmul %19, %4, %cst_11 {dimension_numbers = #tpu.dot_dimension_numbers<[1], [1], [0], [0], [0, 0, 1, 0], [], []>, precision = #tpu.contract_precision<fp32>} : vector<1x4xf32>, vector<32x4xf32>, vector<1x32xf32> -> vector<1x32xf32>
    %c0_12 = arith.constant 0 : index
    %c0_13 = arith.constant 0 : index
    %21 = vector.load %arg3[%c0_12, %c0_13] : memref<1x32xf32, #tpu.memory_space<vmem>>, vector<1x32xf32>
    %22 = arith.mulf %20, %21 : vector<1x32xf32>
    %23 = vector.broadcast %22 : vector<1x32xf32> to vector<8x32xf32>
    %24 = arith.mulf %10, %23 : vector<8x32xf32>
    %c0_14 = arith.constant 0 : index
    %c0_15 = arith.constant 0 : index
    %25 = vector.load %arg4[%c0_14, %c0_15] : memref<1x32xf32, #tpu.memory_space<vmem>>, vector<1x32xf32>
    %26 = vector.broadcast %25 : vector<1x32xf32> to vector<8x32xf32>
    %27 = arith.addf %24, %26 : vector<8x32xf32>
    %c0_16 = arith.constant 0 : index
    %c0_17 = arith.constant 0 : index
    %c0_18 = arith.constant 0 : index
    %28 = vector.load %arg6[%c0_16, %c0_17, %c0_18] : memref<1x8x32xf32, #tpu.memory_space<vmem>>, vector<1x8x32xf32>
    %29 = vector.shape_cast %28 : vector<1x8x32xf32> to vector<8x32xf32>
    %30 = vector.shape_cast %27 : vector<8x32xf32> to vector<1x8x32xf32>
    tpu.vector_store %arg6[%c0_16, %c0_17, %c0_18], %30 {strides = array<i32>} : memref<1x8x32xf32, #tpu.memory_space<vmem>>, vector<1x8x32xf32>,
    return
  }
  func.func @transform_0(%arg0: i32, %arg1: i32) -> (i32, i32, i32) {
    %c0_i32 = arith.constant 0 : i32
    %c0_i32_0 = arith.constant 0 : i32
    return %arg0, %c0_i32, %arg1 : i32, i32, i32
  }
  func.func @transform_1(%arg0: i32, %arg1: i32) -> (i32, i32) {
    %c0_i32 = arith.constant 0 : i32
    %c0_i32_0 = arith.constant 0 : i32
    return %c0_i32, %arg1 : i32, i32
  }
  func.func @transform_2(%arg0: i32, %arg1: i32) -> (i32, i32) {
    %c0_i32 = arith.constant 0 : i32
    %c0_i32_0 = arith.constant 0 : i32
    return %c0_i32, %arg1 : i32, i32
  }
  func.func @transform_3(%arg0: i32, %arg1: i32) -> (i32, i32) {
    %c0_i32 = arith.constant 0 : i32
    %c0_i32_0 = arith.constant 0 : i32
    %c0_i32_1 = arith.constant 0 : i32
    return %c0_i32, %c0_i32_0 : i32, i32
  }
  func.func @transform_4(%arg0: i32, %arg1: i32) -> (i32, i32, i32) {
    %c0_i32 = arith.constant 0 : i32
    %c0_i32_0 = arith.constant 0 : i32
    return %arg0, %c0_i32, %arg1 : i32, i32, i32
  }
}

</mosaic_0001>

<llo_original>
// kernel: tpu_custom_call.1
$region0: #{tpu_custom_call.1}
  #allocation0 [shape = 'u32[]', space=smem, size = 0x4, offset = 0x4, fixed_abs, tag = 'smem constant byte address 0x4 - core index']
  #allocation1 [shape = 'u32[144,128]{1,0:T(1,128)}', space=vmem, size = 0x12000, scoped, tag = 'internal scratch']
  %s0 = inlined_call_operand.vmem [shape: f32[2,8,32], index: 0, kind: input, shape index: {}]
  %s1 = inlined_call_operand.vmem [shape: f32[1,32], index: 1, kind: input, shape index: {}]
  %s2 = inlined_call_operand.vmem [shape: f32[1,32], index: 2, kind: input, shape index: {}]
  %s3 = inlined_call_operand.vmem [shape: f32[32,4], index: 3, kind: input, shape index: {}]
  %s4 = inlined_call_operand.hbm [shape: f32[2,8,32], index: 4, kind: output, shape index: {}]
  %s5 = sld [smem:[#allocation0]]
  $region49: #{tpu_custom_call.1} parent=0
    _
  %s7 = ssub.s32 1, %s5
  %s8 = scalar_select 0, %s7, %s5
  $region1: #{tpu_custom_call.1} parent=0
    #allocation2 [shape = 'u8[8192]{0}', space=vmem, size = 0x2000, scoped, tag = 'output window, operand 0']
    #allocation3 [shape = 's32[2]{0}', space=sflag, size = 0x8, scoped, tag = 'scoped memory for tpu_custom_call.1']
    %9 = vsyncpa [#allocation3], 0
    %s10 = scalar_lea.sflag [#allocation3], 1
    %11 = vsyncpa %s10, 0
    loop: start=0, step=1, limit=4
    $region2: #{tpu_custom_call.1} parent=1 // loop_pre_header
      _
    $region3: #{tpu_custom_call.1} parent=1 // loop_header
      %s13 = sphi 0, %s17
      %p14 = scmp.ge.s32.totalorder %s13, 4
      %s20 = sphi 0, %s32
      %s21 = sphi 0, %s28
      %s22 = sphi 0, %s20
      %s23 = sphi 0, %s21
      %s24 = sphi 0, %s22
      %s25 = sphi 0, %s23
      %s37 = sphi 0, %s39
      %s40 = sphi 0, %s37
      %s41 = sphi 0, %s40
      %s57 = sphi 0, %s41
      %s63 = sphi 0, %s65
      %s66 = sphi 0, %s63
      %s67 = sphi 0, %s66
      %s83 = sphi 0, %s67
      %s89 = sphi 0, %s91
      %s92 = sphi 0, %s89
      %s93 = sphi 0, %s92
      %s109 = sphi 0, %s93
      %s113 = sphi 0, %s113
      %s115 = sphi 0, %s113
      %s116 = sphi 0, %s115
      %s130 = sphi 0, %s116
      %s138 = sphi 0, %s140
      %s141 = sphi 0, %s138
      %s142 = sphi 0, %s141
      %s158 = sphi 0, %s142
    $region4: #{tpu_custom_call.1} parent=1 // loop_header_branch
      %16 = sbr.rel (%p14) target = $region8
    $region5: #{tpu_custom_call.1} parent=1 // loop_body
      %s18 = ssub.s32 %s13, 1
      %s19 = ssub.s32 %s13, 2
      %s26 = sadd.s32 1, %s21
      %p27 = scmp.ge.s32.totalorder %s26, 1
      %s28 = scalar_select %p27, 0, %s26
      %s29 = sadd.s32 1, %s20
      %s30 = scalar_select %p27, %s29, %s20
      %p31 = scmp.ge.s32.totalorder %s30, 2
      %s32 = scalar_select %p31, 0, %s30
      %s33 = ssub.s32 %s20, %s32
      %s34 = ssub.s32 %s21, %s28
      %s35 = sor.u32 %s33, %s34
      %p36 = scmp.eq.s32.totalorder %s35, 0
      %s38 = sadd.s32 %s37, 1
      %s39 = scalar_select %p36, %s37, %s38
      %p42 = pneg %p36
      %p43 = scmp.eq.s32.totalorder %s13, 1
      %p44 = por %p42, %p43
      %p45 = scmp.ne.s32.totalorder %s37, %s40
      %p46 = scmp.eq.s32.totalorder %s13, 0
      %p47 = por %p45, %p46
      %p48 = scmp.ne.s32.totalorder %s37, %s40
      %p49 = scmp.eq.s32.totalorder %s18, 1
      %p50 = por %p48, %p49
      %p51 = scmp.ne.s32.totalorder %s40, %s41
      %p52 = scmp.eq.s32.totalorder %s18, 0
      %p53 = por %p51, %p52
      %p54 = scmp.ne.s32.totalorder %s40, %s41
      %p55 = scmp.eq.s32.totalorder %s19, 1
      %p56 = por %p54, %p55
      %p58 = scmp.ne.s32.totalorder %s41, %s57
      %p59 = scmp.eq.s32.totalorder %s19, 0
      %p60 = por %p58, %p59
      %s61 = ssub.s32 %s21, %s28
      %p62 = scmp.eq.s32.totalorder %s61, 0
      %s64 = sadd.s32 %s63, 1
      %s65 = scalar_select %p62, %s63, %s64
      %p68 = pneg %p62
      %p69 = scmp.eq.s32.totalorder %s13, 1
      %p70 = por %p68, %p69
      %p71 = scmp.ne.s32.totalorder %s63, %s66
      %p72 = scmp.eq.s32.totalorder %s13, 0
      %p73 = por %p71, %p72
      %p74 = scmp.ne.s32.totalorder %s63, %s66
      %p75 = scmp.eq.s32.totalorder %s18, 1
      %p76 = por %p74, %p75
      %p77 = scmp.ne.s32.totalorder %s66, %s67
      %p78 = scmp.eq.s32.totalorder %s18, 0
      %p79 = por %p77, %p78
      %p80 = scmp.ne.s32.totalorder %s66, %s67
      %p81 = scmp.eq.s32.totalorder %s19, 1
      %p82 = por %p80, %p81
      %p84 = scmp.ne.s32.totalorder %s67, %s83
      %p85 = scmp.eq.s32.totalorder %s19, 0
      %p86 = por %p84, %p85
      %s87 = ssub.s32 %s21, %s28
      %p88 = scmp.eq.s32.totalorder %s87, 0
      %s90 = sadd.s32 %s89, 1
      %s91 = scalar_select %p88, %s89, %s90
      %p94 = pneg %p88
      %p95 = scmp.eq.s32.totalorder %s13, 1
      %p96 = por %p94, %p95
      %p97 = scmp.ne.s32.totalorder %s89, %s92
      %p98 = scmp.eq.s32.totalorder %s13, 0
      %p99 = por %p97, %p98
      %p100 = scmp.ne.s32.totalorder %s89, %s92
      %p101 = scmp.eq.s32.totalorder %s18, 1
      %p102 = por %p100, %p101
      %p103 = scmp.ne.s32.totalorder %s92, %s93
      %p104 = scmp.eq.s32.totalorder %s18, 0
      %p105 = por %p103, %p104
      %p106 = scmp.ne.s32.totalorder %s92, %s93
      %p107 = scmp.eq.s32.totalorder %s19, 1
      %p108 = por %p106, %p107
      %p110 = scmp.ne.s32.totalorder %s93, %s109
      %p111 = scmp.eq.s32.totalorder %s19, 0
      %p112 = por %p110, %p111
      %s114 = sadd.s32 %s113, 1
      %p117 = scmp.eq.s32.totalorder %s13, 1
      %p118 = scmp.ne.s32.totalorder %s113, %s115
      %p119 = scmp.eq.s32.totalorder %s13, 0
      %p120 = por %p118, %p119
      %p121 = scmp.ne.s32.totalorder %s113, %s115
      %p122 = scmp.eq.s32.totalorder %s18, 1
      %p123 = por %p121, %p122
      %p124 = scmp.ne.s32.totalorder %s115, %s116
      %p125 = scmp.eq.s32.totalorder %s18, 0
      %p126 = por %p124, %p125
      %p127 = scmp.ne.s32.totalorder %s115, %s116
      %p128 = scmp.eq.s32.totalorder %s19, 1
      %p129 = por %p127, %p128
      %p131 = scmp.ne.s32.totalorder %s116, %s130
      %p132 = scmp.eq.s32.totalorder %s19, 0
      %p133 = por %p131, %p132
      %s134 = ssub.s32 %s20, %s32
      %s135 = ssub.s32 %s21, %s28
      %s136 = sor.u32 %s134, %s135
      %p137 = scmp.eq.s32.totalorder %s136, 0
      %s139 = sadd.s32 %s138, 1
      %s140 = scalar_select %p137, %s138, %s139
      %p143 = pneg %p137
      %p144 = scmp.eq.s32.totalorder %s13, 1
      %p145 = por %p143, %p144
      %p146 = scmp.ne.s32.totalorder %s138, %s141
      %p147 = scmp.eq.s32.totalorder %s13, 0
      %p148 = por %p146, %p147
      %p149 = scmp.ne.s32.totalorder %s138, %s141
      %p150 = scmp.eq.s32.totalorder %s18, 1
      %p151 = por %p149, %p150
      %p152 = scmp.ne.s32.totalorder %s141, %s142
      %p153 = scmp.eq.s32.totalorder %s18, 0
      %p154 = por %p152, %p153
      %p155 = scmp.ne.s32.totalorder %s141, %s142
      %p156 = scmp.eq.s32.totalorder %s19, 1
      %p157 = por %p155, %p156
      %p159 = scmp.ne.s32.totalorder %s142, %s158
      %p160 = scmp.eq.s32.totalorder %s19, 0
      %p161 = por %p159, %p160
      %p162 = scmp.le.s32.totalorder 1, %s13
      %p163 = scmp.lt.s32.totalorder %s13, 3
      %p164 = pnand %p162, %p163
      %p165 = pneg %p164
      // Predicated region
      $region9: #{tpu_custom_call.1} parent=5 // pred_check
        _
      $region10: #{tpu_custom_call.1} parent=5 // pred_check_branch
        %167 = sbr.rel (%p164) target = $region12
      $region11: #{tpu_custom_call.1} parent=5 // pred_region
        %s168 = ssub.s32 %s13, 1
        // Predicated region
        $region13: #{tpu_custom_call.1} parent=11 // pred_check
          %p169 = pneg %p79
        $region14: #{tpu_custom_call.1} parent=11 // pred_check_branch
          %171 = sbr.rel (%p169) target = $region16
        $region15: #{tpu_custom_call.1} parent=11 // pred_region
          %p172 = scmp.lt.s32.totalorder %s23, 0
          %s173 = scalar_select %p172, %s23, 0
          %s174 = scalar_lea.vmem %s1, %s173
        $region16: #{tpu_custom_call.1} parent=11 // pred_fallthru
          _
        // Predicated region
        $region17: #{tpu_custom_call.1} parent=11 // pred_check
          %p175 = pneg %p105
        $region18: #{tpu_custom_call.1} parent=11 // pred_check_branch
          %177 = sbr.rel (%p175) target = $region20
        $region19: #{tpu_custom_call.1} parent=11 // pred_region
          %p178 = scmp.lt.s32.totalorder %s23, 0
          %s179 = scalar_select %p178, %s23, 0
          %s180 = scalar_lea.vmem %s2, %s179
        $region20: #{tpu_custom_call.1} parent=11 // pred_fallthru
          _
        // Predicated region
        $region21: #{tpu_custom_call.1} parent=11 // pred_check
          %p181 = pneg %p126
        $region22: #{tpu_custom_call.1} parent=11 // pred_check_branch
          %183 = sbr.rel (%p181) target = $region24
        $region23: #{tpu_custom_call.1} parent=11 // pred_region
          _
        $region24: #{tpu_custom_call.1} parent=11 // pred_fallthru
          _
      $region12: #{tpu_custom_call.1} parent=5 // pred_fallthru
        _
      %p184 = scmp.lt.s32.totalorder %s13, 2
      // Predicated region
      $region25: #{tpu_custom_call.1} parent=5 // pred_check
        %p185 = pneg %p184
      $region26: #{tpu_custom_call.1} parent=5 // pred_check_branch
        %187 = sbr.rel (%p185) target = $region28
      $region27: #{tpu_custom_call.1} parent=5 // pred_region
        // Predicated region
        $region29: #{tpu_custom_call.1} parent=27 // pred_check
          %p188 = pneg %p47
        $region30: #{tpu_custom_call.1} parent=27 // pred_check_branch
          %190 = sbr.rel (%p188) target = $region32
        $region31: #{tpu_custom_call.1} parent=27 // pred_region
          %p191 = scmp.lt.s32.totalorder %s20, 1
          %s192 = scalar_select %p191, %s20, 1
          %p193 = scmp.lt.s32.totalorder %s21, 0
          %s194 = scalar_select %p193, %s21, 0
          %s195 = sadd.s32 %s194, %s192
          %s196 = smul.addr %s195, 8
          %s197 = scalar_lea.vmem %s0, %s196
        $region32: #{tpu_custom_call.1} parent=27 // pred_fallthru
          _
      $region28: #{tpu_custom_call.1} parent=5 // pred_fallthru
        _
      %p198 = scmp.le.s32.totalorder 1, %s13
      %p199 = scmp.lt.s32.totalorder %s13, 3
      %p200 = pnand %p198, %p199
      %p201 = pneg %p200
      // Predicated region
      $region33: #{tpu_custom_call.1} parent=5 // pred_check
        _
      $region34: #{tpu_custom_call.1} parent=5 // pred_check_branch
        %203 = sbr.rel (%p200) target = $region36
      $region35: #{tpu_custom_call.1} parent=5 // pred_region
        %s204 = ssub.s32 %s13, 1
        %p205 = scmp.lt.s32.totalorder %s22, 1
        %s206 = scalar_select %p205, %s22, 1
        %p207 = scmp.lt.s32.totalorder %s23, 0
        %s208 = scalar_select %p207, %s23, 0
        %s209 = sadd.s32 %s208, %s206
        %s210 = smul.addr %s209, 8
        %s211 = scalar_lea.vmem %s0, %s210
        %p212 = pneg %p53
        %p213 = pneg %p50
        %p214 = scmp.lt.s32.totalorder %s23, 0
        %s215 = scalar_select %p214, %s23, 0
        %s216 = scalar_lea.vmem %s1, %s215
        %p217 = pneg %p79
        %p218 = pneg %p76
        %p219 = scmp.lt.s32.totalorder %s23, 0
        %s220 = scalar_select %p219, %s23, 0
        %s221 = scalar_lea.vmem %s2, %s220
        %p222 = pneg %p105
        %p223 = pneg %p102
        %p224 = pneg %p126
        %p225 = pneg %p123
        %p226 = pneg %p154
        %p227 = pneg %p151
        %s228 = sand.u32 %s141, 1
        %s229 = scalar_lea.sflag [#allocation3], %s228
        %s230 = sand.u32 %s141, 1
        %s231 = smul.addr %s230, 8
        %s232 = scalar_lea.vmem [#allocation2], %s231
        %p233 = scmp.lt.s32.totalorder %s22, 1
        %s234 = scalar_select %p233, %s22, 1
        %p235 = scmp.lt.s32.totalorder %s23, 0
        %s236 = scalar_select %p235, %s23, 0
        %s237 = sadd.s32 %s236, %s234
        %s238 = smul.addr %s237, 8
        %s239 = scalar_lea.vmem %s0, %s238
        %p240 = scmp.lt.s32.totalorder %s23, 0
        %s241 = scalar_select %p240, %s23, 0
        %s242 = scalar_lea.vmem %s1, %s241
        %p243 = scmp.lt.s32.totalorder %s23, 0
        %s244 = scalar_select %p243, %s23, 0
        %s245 = scalar_lea.vmem %s2, %s244
        %v246 = vld [vmem:[%s239] sm:$0xff]
        %vm247 = vcmask 261120
        %v248 = vsel %vm247, %v246, 0.0
        %v249 = vrot.slane %v248, 4
        %v250 = vadd.f32 %v248, %v249
        %v251 = vrot.slane %v250, 2
        %v252 = vadd.f32 %v250, %v251
        %v253 = vrot.slane %v252, 1
        %v254 = vadd.f32 %v252, %v253
        %v255 = vld [vmem:[%s3] sm:$0xff]
        %v256 = vld [vmem:[%s3 + $0x8] sm:$0xff]
        %v257 = vld [vmem:[%s3 + $0x10] sm:$0xff]
        %v258 = vld [vmem:[%s3 + $0x18] sm:$0xff]
        %v260 = vsel %vm247, %v254, 0
        %262 = vmatprep.subr.mxu0 0.0
        %v263 = vand.u32 %v255, 4294901760
        %264 = vmatpush1.msra.mxu0 %v263
        %265 = vmatprep.subr.mxu0 0.0
        %v266 = vand.u32 %v256, 4294901760
        %267 = vmatpush1.msra.mxu0 %v266
        %268 = vmatprep.subr.mxu0 0.0
        %v269 = vand.u32 %v257, 4294901760
        %270 = vmatpush1.msra.mxu0 %v269
        %271 = vmatprep.subr.mxu0 0.0
        %v272 = vand.u32 %v258, 4294901760
        %273 = vmatpush1.msra.mxu0 %v272
        %274 = vmatprep.subr.mxu0 0.0
        %275 = vmatpush1.msra.mxu0 0.0
        %276 = vmatprep.subr.mxu0 0.0
        %277 = vmatpush1.msra.mxu0 0.0
        %278 = vmatprep.subr.mxu0 0.0
        %279 = vmatpush1.msra.mxu0 0.0
        %280 = vmatprep.subr.mxu0 0.0
        %281 = vmatpush1.msra.mxu0 0.0
        %282 = vmatprep.subr.mxu0 0.0
        %283 = vmatpush1.msra.mxu0 0.0
        %284 = vmatprep.subr.mxu0 0.0
        %285 = vmatpush1.msra.mxu0 0.0
        %286 = vmatprep.subr.mxu0 0.0
        %287 = vmatpush1.msra.mxu0 0.0
        %288 = vmatprep.subr.mxu0 0.0
        %289 = vmatpush1.msra.mxu0 0.0
        %290 = vmatprep.subr.mxu0 0.0
        %291 = vmatpush1.msra.mxu0 0.0
        %292 = vmatprep.subr.mxu0 0.0
        %293 = vmatpush1.msra.mxu0 0.0
        %294 = vmatprep.subr.mxu0 0.0
        %295 = vmatpush1.msra.mxu0 0.0
        %296 = vmatprep.subr.mxu0 0.0
        %297 = vmatpush1.msra.mxu0 0.0
        %298 = vmatprep.subr.mxu0 0.0
        %299 = vmatpush1.msra.mxu0 0.0
        %300 = vmatprep.subr.mxu0 0.0
        %301 = vmatpush1.msra.mxu0 0.0
        %302 = vmatprep.subr.mxu0 0.0
        %303 = vmatpush1.msra.mxu0 0.0
        %304 = vmatprep.subr.mxu0 0.0
        %305 = vmatpush1.msra.mxu0 0.0
        %306 = vmatprep.subr.mxu0 0.0
        %307 = vmatpush1.msra.mxu0 0.0
        %308 = vmatprep.subr.mxu0 0.0
        %309 = vmatpush1.msra.mxu0 0.0
        %310 = vmatprep.subr.mxu0 0.0
        %311 = vmatpush1.msra.mxu0 0.0
        %312 = vmatprep.subr.mxu0 0.0
        %313 = vmatpush1.msra.mxu0 0.0
        %314 = vmatprep.subr.mxu0 0.0
        %315 = vmatpush1.msra.mxu0 0.0
        %316 = vmatprep.subr.mxu0 0.0
        %317 = vmatpush1.msra.mxu0 0.0
        %318 = vmatprep.subr.mxu0 0.0
        %319 = vmatpush1.msra.mxu0 0.0
        %320 = vmatprep.subr.mxu0 0.0
        %321 = vmatpush1.msra.mxu0 0.0
        %322 = vmatprep.subr.mxu0 0.0
        %323 = vmatpush1.msra.mxu0 0.0
        %324 = vmatprep.subr.mxu0 0.0
        %325 = vmatpush1.msra.mxu0 0.0
        %326 = vmatprep.subr.mxu0 0.0
        %327 = vmatpush1.msra.mxu0 0.0
        %328 = vmatprep.subr.mxu0 0.0
        %329 = vmatpush1.msra.mxu0 0.0
        %330 = vmatprep.mubr.f32.mxu0 0.0
        %v331 = vand.u32 %v260, 4294901760
        %v332 = vsub.f32 %v260, %v331
        %v333 = vand.u32 %v332, 4294901760
        %v334 = vsub.f32 %v332, %v333
        %v335 = vand.u32 %v334, 4294901760
        %336 = vmatmul.mubr.f32.gmra.mrb[0].mxu0 %v335
        %v337 = vpop.f32.mrb[0].mxu0
        %v338 = vadd.f32 0.0, %v337
        %v339 = vpop.f32.mrb[0].mxu0
        %340 = vdwg.mxu0
        %341 = vmatprep.subr.mxu0 0.0
        %v342 = vand.u32 %v255, 4294901760
        %v343 = vsub.f32 %v255, %v342
        %v344 = vand.u32 %v343, 4294901760
        %v345 = vsub.f32 %v343, %v344
        %v346 = vand.u32 %v345, 4294901760
        %347 = vmatpush1.msra.mxu0 %v346
        %348 = vmatprep.subr.mxu0 0.0
        %v349 = vand.u32 %v256, 4294901760
        %v350 = vsub.f32 %v256, %v349
        %v351 = vand.u32 %v350, 4294901760
        %v352 = vsub.f32 %v350, %v351
        %v353 = vand.u32 %v352, 4294901760
        %354 = vmatpush1.msra.mxu0 %v353
        %355 = vmatprep.subr.mxu0 0.0
        %v356 = vand.u32 %v257, 4294901760
        %v357 = vsub.f32 %v257, %v356
        %v358 = vand.u32 %v357, 4294901760
        %v359 = vsub.f32 %v357, %v358
        %v360 = vand.u32 %v359, 4294901760
        %361 = vmatpush1.msra.mxu0 %v360
        %362 = vmatprep.subr.mxu0 0.0
        %v363 = vand.u32 %v258, 4294901760
        %v364 = vsub.f32 %v258, %v363
        %v365 = vand.u32 %v364, 4294901760
        %v366 = vsub.f32 %v364, %v365
        %v367 = vand.u32 %v366, 4294901760
        %368 = vmatpush1.msra.mxu0 %v367
        %369 = vmatprep.subr.mxu0 0.0
        %370 = vmatpush1.msra.mxu0 0.0
        %371 = vmatprep.subr.mxu0 0.0
        %372 = vmatpush1.msra.mxu0 0.0
        %373 = vmatprep.subr.mxu0 0.0
        %374 = vmatpush1.msra.mxu0 0.0
        %375 = vmatprep.subr.mxu0 0.0
        %376 = vmatpush1.msra.mxu0 0.0
        %377 = vmatprep.subr.mxu0 0.0
        %378 = vmatpush1.msra.mxu0 0.0
        %379 = vmatprep.subr.mxu0 0.0
        %380 = vmatpush1.msra.mxu0 0.0
        %381 = vmatprep.subr.mxu0 0.0
        %382 = vmatpush1.msra.mxu0 0.0
        %383 = vmatprep.subr.mxu0 0.0
        %384 = vmatpush1.msra.mxu0 0.0
        %385 = vmatprep.subr.mxu0 0.0
        %386 = vmatpush1.msra.mxu0 0.0
        %387 = vmatprep.subr.mxu0 0.0
        %388 = vmatpush1.msra.mxu0 0.0
        %389 = vmatprep.subr.mxu0 0.0
        %390 = vmatpush1.msra.mxu0 0.0
        %391 = vmatprep.subr.mxu0 0.0
        %392 = vmatpush1.msra.mxu0 0.0
        %393 = vmatprep.subr.mxu0 0.0
        %394 = vmatpush1.msra.mxu0 0.0
        %395 = vmatprep.subr.mxu0 0.0
        %396 = vmatpush1.msra.mxu0 0.0
        %397 = vmatprep.subr.mxu0 0.0
        %398 = vmatpush1.msra.mxu0 0.0
        %399 = vmatprep.subr.mxu0 0.0
        %400 = vmatpush1.msra.mxu0 0.0
        %401 = vmatprep.subr.mxu0 0.0
        %402 = vmatpush1.msra.mxu0 0.0
        %403 = vmatprep.subr.mxu0 0.0
        %404 = vmatpush1.msra.mxu0 0.0
        %405 = vmatprep.subr.mxu0 0.0
        %406 = vmatpush1.msra.mxu0 0.0
        %407 = vmatprep.subr.mxu0 0.0
        %408 = vmatpush1.msra.mxu0 0.0
        %409 = vmatprep.subr.mxu0 0.0
        %410 = vmatpush1.msra.mxu0 0.0
        %411 = vmatprep.subr.mxu0 0.0
        %412 = vmatpush1.msra.mxu0 0.0
        %413 = vmatprep.subr.mxu0 0.0
        %414 = vmatpush1.msra.mxu0 0.0
        %415 = vmatprep.subr.mxu0 0.0
        %416 = vmatpush1.msra.mxu0 0.0
        %417 = vmatprep.subr.mxu0 0.0
        %418 = vmatpush1.msra.mxu0 0.0
        %419 = vmatprep.subr.mxu0 0.0
        %420 = vmatpush1.msra.mxu0 0.0
        %421 = vmatprep.subr.mxu0 0.0
        %422 = vmatpush1.msra.mxu0 0.0
        %423 = vmatprep.subr.mxu0 0.0
        %424 = vmatpush1.msra.mxu0 0.0
        %425 = vmatprep.mubr.f32.mxu0 0.0
        %v426 = vand.u32 %v260, 4294901760
        %427 = vmatmul.mubr.f32.gmra.mrb[0].mxu0 %v426
        %v428 = vpop.f32.mrb[0].mxu0
        %v429 = vadd.f32 %v338, %v428
        %v430 = vpop.f32.mrb[0].mxu0
        %431 = vdwg.mxu0
        %432 = vmatprep.subr.mxu0 0.0
        %v433 = vand.u32 %v255, 4294901760
        %v434 = vsub.f32 %v255, %v433
        %435 = vmatpush1.msra.mxu0 %v434
        %436 = vmatprep.subr.mxu0 0.0
        %v437 = vand.u32 %v256, 4294901760
        %v438 = vsub.f32 %v256, %v437
        %439 = vmatpush1.msra.mxu0 %v438
        %440 = vmatprep.subr.mxu0 0.0
        %v441 = vand.u32 %v257, 4294901760
        %v442 = vsub.f32 %v257, %v441
        %443 = vmatpush1.msra.mxu0 %v442
        %444 = vmatprep.subr.mxu0 0.0
        %v445 = vand.u32 %v258, 4294901760
        %v446 = vsub.f32 %v258, %v445
        %447 = vmatpush1.msra.mxu0 %v446
        %448 = vmatprep.subr.mxu0 0.0
        %449 = vmatpush1.msra.mxu0 0.0
        %450 = vmatprep.subr.mxu0 0.0
        %451 = vmatpush1.msra.mxu0 0.0
        %452 = vmatprep.subr.mxu0 0.0
        %453 = vmatpush1.msra.mxu0 0.0
        %454 = vmatprep.subr.mxu0 0.0
        %455 = vmatpush1.msra.mxu0 0.0
        %456 = vmatprep.subr.mxu0 0.0
        %457 = vmatpush1.msra.mxu0 0.0
        %458 = vmatprep.subr.mxu0 0.0
        %459 = vmatpush1.msra.mxu0 0.0
        %460 = vmatprep.subr.mxu0 0.0
        %461 = vmatpush1.msra.mxu0 0.0
        %462 = vmatprep.subr.mxu0 0.0
        %463 = vmatpush1.msra.mxu0 0.0
        %464 = vmatprep.subr.mxu0 0.0
        %465 = vmatpush1.msra.mxu0 0.0
        %466 = vmatprep.subr.mxu0 0.0
        %467 = vmatpush1.msra.mxu0 0.0
        %468 = vmatprep.subr.mxu0 0.0
        %469 = vmatpush1.msra.mxu0 0.0
        %470 = vmatprep.subr.mxu0 0.0
        %471 = vmatpush1.msra.mxu0 0.0
        %472 = vmatprep.subr.mxu0 0.0
        %473 = vmatpush1.msra.mxu0 0.0
        %474 = vmatprep.subr.mxu0 0.0
        %475 = vmatpush1.msra.mxu0 0.0
        %476 = vmatprep.subr.mxu0 0.0
        %477 = vmatpush1.msra.mxu0 0.0
        %478 = vmatprep.subr.mxu0 0.0
        %479 = vmatpush1.msra.mxu0 0.0
        %480 = vmatprep.subr.mxu0 0.0
        %481 = vmatpush1.msra.mxu0 0.0
        %482 = vmatprep.subr.mxu0 0.0
        %483 = vmatpush1.msra.mxu0 0.0
        %484 = vmatprep.subr.mxu0 0.0
        %485 = vmatpush1.msra.mxu0 0.0
        %486 = vmatprep.subr.mxu0 0.0
        %487 = vmatpush1.msra.mxu0 0.0
        %488 = vmatprep.subr.mxu0 0.0
        %489 = vmatpush1.msra.mxu0 0.0
        %490 = vmatprep.subr.mxu0 0.0
        %491 = vmatpush1.msra.mxu0 0.0
        %492 = vmatprep.subr.mxu0 0.0
        %493 = vmatpush1.msra.mxu0 0.0
        %494 = vmatprep.subr.mxu0 0.0
        %495 = vmatpush1.msra.mxu0 0.0
        %496 = vmatprep.subr.mxu0 0.0
        %497 = vmatpush1.msra.mxu0 0.0
        %498 = vmatprep.subr.mxu0 0.0
        %499 = vmatpush1.msra.mxu0 0.0
        %500 = vmatprep.subr.mxu0 0.0
        %501 = vmatpush1.msra.mxu0 0.0
        %502 = vmatprep.subr.mxu0 0.0
        %503 = vmatpush1.msra.mxu0 0.0
        %504 = vmatprep.mubr.f32.mxu0 0.0
        %v505 = vand.u32 %v260, 4294901760
        %v506 = vsub.f32 %v260, %v505
        %507 = vmatmul.mubr.f32.gmra.mrb[0].mxu0 %v506
        %v508 = vpop.f32.mrb[0].mxu0
        %v509 = vadd.f32 %v429, %v508
        %v510 = vpop.f32.mrb[0].mxu0
        %511 = vdwg.mxu0
        %512 = vmatprep.subr.mxu0 0.0
        %v513 = vand.u32 %v255, 4294901760
        %514 = vmatpush1.msra.mxu0 %v513
        %515 = vmatprep.subr.mxu0 0.0
        %v516 = vand.u32 %v256, 4294901760
        %517 = vmatpush1.msra.mxu0 %v516
        %518 = vmatprep.subr.mxu0 0.0
        %v519 = vand.u32 %v257, 4294901760
        %520 = vmatpush1.msra.mxu0 %v519
        %521 = vmatprep.subr.mxu0 0.0
        %v522 = vand.u32 %v258, 4294901760
        %523 = vmatpush1.msra.mxu0 %v522
        %524 = vmatprep.subr.mxu0 0.0
        %525 = vmatpush1.msra.mxu0 0.0
        %526 = vmatprep.subr.mxu0 0.0
        %527 = vmatpush1.msra.mxu0 0.0
        %528 = vmatprep.subr.mxu0 0.0
        %529 = vmatpush1.msra.mxu0 0.0
        %530 = vmatprep.subr.mxu0 0.0
        %531 = vmatpush1.msra.mxu0 0.0
        %532 = vmatprep.subr.mxu0 0.0
        %533 = vmatpush1.msra.mxu0 0.0
        %534 = vmatprep.subr.mxu0 0.0
        %535 = vmatpush1.msra.mxu0 0.0
        %536 = vmatprep.subr.mxu0 0.0
        %537 = vmatpush1.msra.mxu0 0.0
        %538 = vmatprep.subr.mxu0 0.0
        %539 = vmatpush1.msra.mxu0 0.0
        %540 = vmatprep.subr.mxu0 0.0
        %541 = vmatpush1.msra.mxu0 0.0
        %542 = vmatprep.subr.mxu0 0.0
        %543 = vmatpush1.msra.mxu0 0.0
        %544 = vmatprep.subr.mxu0 0.0
        %545 = vmatpush1.msra.mxu0 0.0
        %546 = vmatprep.subr.mxu0 0.0
        %547 = vmatpush1.msra.mxu0 0.0
        %548 = vmatprep.subr.mxu0 0.0
        %549 = vmatpush1.msra.mxu0 0.0
        %550 = vmatprep.subr.mxu0 0.0
        %551 = vmatpush1.msra.mxu0 0.0
        %552 = vmatprep.subr.mxu0 0.0
        %553 = vmatpush1.msra.mxu0 0.0
        %554 = vmatprep.subr.mxu0 0.0
        %555 = vmatpush1.msra.mxu0 0.0
        %556 = vmatprep.subr.mxu0 0.0
        %557 = vmatpush1.msra.mxu0 0.0
        %558 = vmatprep.subr.mxu0 0.0
        %559 = vmatpush1.msra.mxu0 0.0
        %560 = vmatprep.subr.mxu0 0.0
        %561 = vmatpush1.msra.mxu0 0.0
        %562 = vmatprep.subr.mxu0 0.0
        %563 = vmatpush1.msra.mxu0 0.0
        %564 = vmatprep.subr.mxu0 0.0
        %565 = vmatpush1.msra.mxu0 0.0
        %566 = vmatprep.subr.mxu0 0.0
        %567 = vmatpush1.msra.mxu0 0.0
        %568 = vmatprep.subr.mxu0 0.0
        %569 = vmatpush1.msra.mxu0 0.0
        %570 = vmatprep.subr.mxu0 0.0
        %571 = vmatpush1.msra.mxu0 0.0
        %572 = vmatprep.subr.mxu0 0.0
        %573 = vmatpush1.msra.mxu0 0.0
        %574 = vmatprep.subr.mxu0 0.0
        %575 = vmatpush1.msra.mxu0 0.0
        %576 = vmatprep.subr.mxu0 0.0
        %577 = vmatpush1.msra.mxu0 0.0
        %578 = vmatprep.subr.mxu0 0.0
        %579 = vmatpush1.msra.mxu0 0.0
        %580 = vmatprep.mubr.f32.mxu0 0.0
        %v581 = vand.u32 %v260, 4294901760
        %v582 = vsub.f32 %v260, %v581
        %v583 = vand.u32 %v582, 4294901760
        %584 = vmatmul.mubr.f32.gmra.mrb[0].mxu0 %v583
        %v585 = vpop.f32.mrb[0].mxu0
        %v586 = vadd.f32 %v509, %v585
        %v587 = vpop.f32.mrb[0].mxu0
        %588 = vdwg.mxu0
        %589 = vmatprep.subr.mxu0 0.0
        %v590 = vand.u32 %v255, 4294901760
        %v591 = vsub.f32 %v255, %v590
        %v592 = vand.u32 %v591, 4294901760
        %593 = vmatpush1.msra.mxu0 %v592
        %594 = vmatprep.subr.mxu0 0.0
        %v595 = vand.u32 %v256, 4294901760
        %v596 = vsub.f32 %v256, %v595
        %v597 = vand.u32 %v596, 4294901760
        %598 = vmatpush1.msra.mxu0 %v597
        %599 = vmatprep.subr.mxu0 0.0
        %v600 = vand.u32 %v257, 4294901760
        %v601 = vsub.f32 %v257, %v600
        %v602 = vand.u32 %v601, 4294901760
        %603 = vmatpush1.msra.mxu0 %v602
        %604 = vmatprep.subr.mxu0 0.0
        %v605 = vand.u32 %v258, 4294901760
        %v606 = vsub.f32 %v258, %v605
        %v607 = vand.u32 %v606, 4294901760
        %608 = vmatpush1.msra.mxu0 %v607
        %609 = vmatprep.subr.mxu0 0.0
        %610 = vmatpush1.msra.mxu0 0.0
        %611 = vmatprep.subr.mxu0 0.0
        %612 = vmatpush1.msra.mxu0 0.0
        %613 = vmatprep.subr.mxu0 0.0
        %614 = vmatpush1.msra.mxu0 0.0
        %615 = vmatprep.subr.mxu0 0.0
        %616 = vmatpush1.msra.mxu0 0.0
        %617 = vmatprep.subr.mxu0 0.0
        %618 = vmatpush1.msra.mxu0 0.0
        %619 = vmatprep.subr.mxu0 0.0
        %620 = vmatpush1.msra.mxu0 0.0
        %621 = vmatprep.subr.mxu0 0.0
        %622 = vmatpush1.msra.mxu0 0.0
        %623 = vmatprep.subr.mxu0 0.0
        %624 = vmatpush1.msra.mxu0 0.0
        %625 = vmatprep.subr.mxu0 0.0
        %626 = vmatpush1.msra.mxu0 0.0
        %627 = vmatprep.subr.mxu0 0.0
        %628 = vmatpush1.msra.mxu0 0.0
        %629 = vmatprep.subr.mxu0 0.0
        %630 = vmatpush1.msra.mxu0 0.0
        %631 = vmatprep.subr.mxu0 0.0
        %632 = vmatpush1.msra.mxu0 0.0
        %633 = vmatprep.subr.mxu0 0.0
        %634 = vmatpush1.msra.mxu0 0.0
        %635 = vmatprep.subr.mxu0 0.0
        %636 = vmatpush1.msra.mxu0 0.0
        %637 = vmatprep.subr.mxu0 0.0
        %638 = vmatpush1.msra.mxu0 0.0
        %639 = vmatprep.subr.mxu0 0.0
        %640 = vmatpush1.msra.mxu0 0.0
        %641 = vmatprep.subr.mxu0 0.0
        %642 = vmatpush1.msra.mxu0 0.0
        %643 = vmatprep.subr.mxu0 0.0
        %644 = vmatpush1.msra.mxu0 0.0
        %645 = vmatprep.subr.mxu0 0.0
        %646 = vmatpush1.msra.mxu0 0.0
        %647 = vmatprep.subr.mxu0 0.0
        %648 = vmatpush1.msra.mxu0 0.0
        %649 = vmatprep.subr.mxu0 0.0
        %650 = vmatpush1.msra.mxu0 0.0
        %651 = vmatprep.subr.mxu0 0.0
        %652 = vmatpush1.msra.mxu0 0.0
        %653 = vmatprep.subr.mxu0 0.0
        %654 = vmatpush1.msra.mxu0 0.0
        %655 = vmatprep.subr.mxu0 0.0
        %656 = vmatpush1.msra.mxu0 0.0
        %657 = vmatprep.subr.mxu0 0.0
        %658 = vmatpush1.msra.mxu0 0.0
        %659 = vmatprep.subr.mxu0 0.0
        %660 = vmatpush1.msra.mxu0 0.0
        %661 = vmatprep.subr.mxu0 0.0
        %662 = vmatpush1.msra.mxu0 0.0
        %663 = vmatprep.subr.mxu0 0.0
        %664 = vmatpush1.msra.mxu0 0.0
        %665 = vmatprep.mubr.f32.mxu0 0.0
        %v666 = vand.u32 %v260, 4294901760
        %667 = vmatmul.mubr.f32.gmra.mrb[0].mxu0 %v666
        %v668 = vpop.f32.mrb[0].mxu0
        %v669 = vadd.f32 %v586, %v668
        %v670 = vpop.f32.mrb[0].mxu0
        %671 = vdwg.mxu0
        %672 = vmatprep.subr.mxu0 0.0
        %v673 = vand.u32 %v255, 4294901760
        %674 = vmatpush1.msra.mxu0 %v673
        %675 = vmatprep.subr.mxu0 0.0
        %v676 = vand.u32 %v256, 4294901760
        %677 = vmatpush1.msra.mxu0 %v676
        %678 = vmatprep.subr.mxu0 0.0
        %v679 = vand.u32 %v257, 4294901760
        %680 = vmatpush1.msra.mxu0 %v679
        %681 = vmatprep.subr.mxu0 0.0
        %v682 = vand.u32 %v258, 4294901760
        %683 = vmatpush1.msra.mxu0 %v682
        %684 = vmatprep.subr.mxu0 0.0
        %685 = vmatpush1.msra.mxu0 0.0
        %686 = vmatprep.subr.mxu0 0.0
        %687 = vmatpush1.msra.mxu0 0.0
        %688 = vmatprep.subr.mxu0 0.0
        %689 = vmatpush1.msra.mxu0 0.0
        %690 = vmatprep.subr.mxu0 0.0
        %691 = vmatpush1.msra.mxu0 0.0
        %692 = vmatprep.subr.mxu0 0.0
        %693 = vmatpush1.msra.mxu0 0.0
        %694 = vmatprep.subr.mxu0 0.0
        %695 = vmatpush1.msra.mxu0 0.0
        %696 = vmatprep.subr.mxu0 0.0
        %697 = vmatpush1.msra.mxu0 0.0
        %698 = vmatprep.subr.mxu0 0.0
        %699 = vmatpush1.msra.mxu0 0.0
        %700 = vmatprep.subr.mxu0 0.0
        %701 = vmatpush1.msra.mxu0 0.0
        %702 = vmatprep.subr.mxu0 0.0
        %703 = vmatpush1.msra.mxu0 0.0
        %704 = vmatprep.subr.mxu0 0.0
        %705 = vmatpush1.msra.mxu0 0.0
        %706 = vmatprep.subr.mxu0 0.0
        %707 = vmatpush1.msra.mxu0 0.0
        %708 = vmatprep.subr.mxu0 0.0
        %709 = vmatpush1.msra.mxu0 0.0
        %710 = vmatprep.subr.mxu0 0.0
        %711 = vmatpush1.msra.mxu0 0.0
        %712 = vmatprep.subr.mxu0 0.0
        %713 = vmatpush1.msra.mxu0 0.0
        %714 = vmatprep.subr.mxu0 0.0
        %715 = vmatpush1.msra.mxu0 0.0
        %716 = vmatprep.subr.mxu0 0.0
        %717 = vmatpush1.msra.mxu0 0.0
        %718 = vmatprep.subr.mxu0 0.0
        %719 = vmatpush1.msra.mxu0 0.0
        %720 = vmatprep.subr.mxu0 0.0
        %721 = vmatpush1.msra.mxu0 0.0
        %722 = vmatprep.subr.mxu0 0.0
        %723 = vmatpush1.msra.mxu0 0.0
        %724 = vmatprep.subr.mxu0 0.0
        %725 = vmatpush1.msra.mxu0 0.0
        %726 = vmatprep.subr.mxu0 0.0
        %727 = vmatpush1.msra.mxu0 0.0
        %728 = vmatprep.subr.mxu0 0.0
        %729 = vmatpush1.msra.mxu0 0.0
        %730 = vmatprep.subr.mxu0 0.0
        %731 = vmatpush1.msra.mxu0 0.0
        %732 = vmatprep.subr.mxu0 0.0
        %733 = vmatpush1.msra.mxu0 0.0
        %734 = vmatprep.subr.mxu0 0.0
        %735 = vmatpush1.msra.mxu0 0.0
        %736 = vmatprep.subr.mxu0 0.0
        %737 = vmatpush1.msra.mxu0 0.0
        %738 = vmatprep.subr.mxu0 0.0
        %739 = vmatpush1.msra.mxu0 0.0
        %740 = vmatprep.mubr.f32.mxu0 0.0
        %v741 = vand.u32 %v260, 4294901760
        %742 = vmatmul.mubr.f32.gmra.mrb[0].mxu0 %v741
        %v743 = vpop.f32.mrb[0].mxu0
        %v744 = vadd.f32 %v669, %v743
        %v745 = vpop.f32.mrb[0].mxu0
        %746 = vdwg.mxu0
        %v747 = vrcp.pop 64.0
        %v748 = vmul.f32 %v744, %v747
        %vm749 = vcmask 31744
        %v751 = vsel %vm749, %v748, 0
        %v754 = vsel %vm749, %v255, 0
        %v757 = vsel %vm749, %v256, 0
        %v760 = vsel %vm749, %v257, 0
        %v763 = vsel %vm749, %v258, 0
        %765 = vmatprep.subr.mxu0 0.0
        %v766 = vand.u32 %v754, 4294901760
        %767 = vmatpush1.xpose.msra.mxu0 %v766
        %768 = vmatprep.subr.mxu0 0.0
        %v769 = vand.u32 %v757, 4294901760
        %770 = vmatpush1.xpose.msra.mxu0 %v769
        %771 = vmatprep.subr.mxu0 0.0
        %v772 = vand.u32 %v760, 4294901760
        %773 = vmatpush1.xpose.msra.mxu0 %v772
        %774 = vmatprep.subr.mxu0 0.0
        %v775 = vand.u32 %v763, 4294901760
        %776 = vmatpush1.xpose.msra.mxu0 %v775
        %777 = vmatprep.subr.mxu0 0.0
        %778 = vmatpush1.xpose.msra.mxu0 0.0
        %779 = vmatprep.subr.mxu0 0.0
        %780 = vmatpush1.xpose.msra.mxu0 0.0
        %781 = vmatprep.subr.mxu0 0.0
        %782 = vmatpush1.xpose.msra.mxu0 0.0
        %783 = vmatprep.subr.mxu0 0.0
        %784 = vmatpush1.xpose.msra.mxu0 0.0
        %785 = vmatprep.subr.mxu0 0.0
        %786 = vmatpush1.xpose.msra.mxu0 0.0
        %787 = vmatprep.subr.mxu0 0.0
        %788 = vmatpush1.xpose.msra.mxu0 0.0
        %789 = vmatprep.subr.mxu0 0.0
        %790 = vmatpush1.xpose.msra.mxu0 0.0
        %791 = vmatprep.subr.mxu0 0.0
        %792 = vmatpush1.xpose.msra.mxu0 0.0
        %793 = vmatprep.subr.mxu0 0.0
        %794 = vmatpush1.xpose.msra.mxu0 0.0
        %795 = vmatprep.subr.mxu0 0.0
        %796 = vmatpush1.xpose.msra.mxu0 0.0
        %797 = vmatprep.subr.mxu0 0.0
        %798 = vmatpush1.xpose.msra.mxu0 0.0
        %799 = vmatprep.subr.mxu0 0.0
        %800 = vmatpush1.xpose.msra.mxu0 0.0
        %801 = vmatprep.subr.mxu0 0.0
        %802 = vmatpush1.xpose.msra.mxu0 0.0
        %803 = vmatprep.subr.mxu0 0.0
        %804 = vmatpush1.xpose.msra.mxu0 0.0
        %805 = vmatprep.subr.mxu0 0.0
        %806 = vmatpush1.xpose.msra.mxu0 0.0
        %807 = vmatprep.subr.mxu0 0.0
        %808 = vmatpush1.xpose.msra.mxu0 0.0
        %809 = vmatprep.subr.mxu0 0.0
        %810 = vmatpush1.xpose.msra.mxu0 0.0
        %811 = vmatprep.subr.mxu0 0.0
        %812 = vmatpush1.xpose.msra.mxu0 0.0
        %813 = vmatprep.subr.mxu0 0.0
        %814 = vmatpush1.xpose.msra.mxu0 0.0
        %815 = vmatprep.subr.mxu0 0.0
        %816 = vmatpush1.xpose.msra.mxu0 0.0
        %817 = vmatprep.subr.mxu0 0.0
        %818 = vmatpush1.xpose.msra.mxu0 0.0
        %819 = vmatprep.subr.mxu0 0.0
        %820 = vmatpush1.xpose.msra.mxu0 0.0
        %821 = vmatprep.subr.mxu0 0.0
        %822 = vmatpush1.xpose.msra.mxu0 0.0
        %823 = vmatprep.subr.mxu0 0.0
        %824 = vmatpush1.xpose.msra.mxu0 0.0
        %825 = vmatprep.subr.mxu0 0.0
        %826 = vmatpush1.xpose.msra.mxu0 0.0
        %827 = vmatprep.subr.mxu0 0.0
        %828 = vmatpush1.xpose.msra.mxu0 0.0
        %829 = vmatprep.subr.mxu0 0.0
        %830 = vmatpush1.xpose.msra.mxu0 0.0
        %831 = vmatprep.subr.mxu0 0.0
        %832 = vmatpush1.xpose.msra.mxu0 0.0
        %833 = vmatprep.mubr.f32.mxu0 0.0
        %v834 = vand.u32 %v751, 4294901760
        %v835 = vsub.f32 %v751, %v834
        %v836 = vand.u32 %v835, 4294901760
        %v837 = vsub.f32 %v835, %v836
        %v838 = vand.u32 %v837, 4294901760
        %839 = vmatmul.mubr.f32.gmra.mrb[0].mxu0 %v838
        %v840 = vpop.f32.mrb[0].mxu0
        %v841 = vadd.f32 0.0, %v840
        %v842 = vpop.f32.mrb[0].mxu0
        %843 = vdwg.mxu0
        %844 = vmatprep.subr.mxu0 0.0
        %v845 = vand.u32 %v754, 4294901760
        %v846 = vsub.f32 %v754, %v845
        %v847 = vand.u32 %v846, 4294901760
        %v848 = vsub.f32 %v846, %v847
        %v849 = vand.u32 %v848, 4294901760
        %850 = vmatpush1.xpose.msra.mxu0 %v849
        %851 = vmatprep.subr.mxu0 0.0
        %v852 = vand.u32 %v757, 4294901760
        %v853 = vsub.f32 %v757, %v852
        %v854 = vand.u32 %v853, 4294901760
        %v855 = vsub.f32 %v853, %v854
        %v856 = vand.u32 %v855, 4294901760
        %857 = vmatpush1.xpose.msra.mxu0 %v856
        %858 = vmatprep.subr.mxu0 0.0
        %v859 = vand.u32 %v760, 4294901760
        %v860 = vsub.f32 %v760, %v859
        %v861 = vand.u32 %v860, 4294901760
        %v862 = vsub.f32 %v860, %v861
        %v863 = vand.u32 %v862, 4294901760
        %864 = vmatpush1.xpose.msra.mxu0 %v863
        %865 = vmatprep.subr.mxu0 0.0
        %v866 = vand.u32 %v763, 4294901760
        %v867 = vsub.f32 %v763, %v866
        %v868 = vand.u32 %v867, 4294901760
        %v869 = vsub.f32 %v867, %v868
        %v870 = vand.u32 %v869, 4294901760
        %871 = vmatpush1.xpose.msra.mxu0 %v870
        %872 = vmatprep.subr.mxu0 0.0
        %873 = vmatpush1.xpose.msra.mxu0 0.0
        %874 = vmatprep.subr.mxu0 0.0
        %875 = vmatpush1.xpose.msra.mxu0 0.0
        %876 = vmatprep.subr.mxu0 0.0
        %877 = vmatpush1.xpose.msra.mxu0 0.0
        %878 = vmatprep.subr.mxu0 0.0
        %879 = vmatpush1.xpose.msra.mxu0 0.0
        %880 = vmatprep.subr.mxu0 0.0
        %881 = vmatpush1.xpose.msra.mxu0 0.0
        %882 = vmatprep.subr.mxu0 0.0
        %883 = vmatpush1.xpose.msra.mxu0 0.0
        %884 = vmatprep.subr.mxu0 0.0
        %885 = vmatpush1.xpose.msra.mxu0 0.0
        %886 = vmatprep.subr.mxu0 0.0
        %887 = vmatpush1.xpose.msra.mxu0 0.0
        %888 = vmatprep.subr.mxu0 0.0
        %889 = vmatpush1.xpose.msra.mxu0 0.0
        %890 = vmatprep.subr.mxu0 0.0
        %891 = vmatpush1.xpose.msra.mxu0 0.0
        %892 = vmatprep.subr.mxu0 0.0
        %893 = vmatpush1.xpose.msra.mxu0 0.0
        %894 = vmatprep.subr.mxu0 0.0
        %895 = vmatpush1.xpose.msra.mxu0 0.0
        %896 = vmatprep.subr.mxu0 0.0
        %897 = vmatpush1.xpose.msra.mxu0 0.0
        %898 = vmatprep.subr.mxu0 0.0
        %899 = vmatpush1.xpose.msra.mxu0 0.0
        %900 = vmatprep.subr.mxu0 0.0
        %901 = vmatpush1.xpose.msra.mxu0 0.0
        %902 = vmatprep.subr.mxu0 0.0
        %903 = vmatpush1.xpose.msra.mxu0 0.0
        %904 = vmatprep.subr.mxu0 0.0
        %905 = vmatpush1.xpose.msra.mxu0 0.0
        %906 = vmatprep.subr.mxu0 0.0
        %907 = vmatpush1.xpose.msra.mxu0 0.0
        %908 = vmatprep.subr.mxu0 0.0
        %909 = vmatpush1.xpose.msra.mxu0 0.0
        %910 = vmatprep.subr.mxu0 0.0
        %911 = vmatpush1.xpose.msra.mxu0 0.0
        %912 = vmatprep.subr.mxu0 0.0
        %913 = vmatpush1.xpose.msra.mxu0 0.0
        %914 = vmatprep.subr.mxu0 0.0
        %915 = vmatpush1.xpose.msra.mxu0 0.0
        %916 = vmatprep.subr.mxu0 0.0
        %917 = vmatpush1.xpose.msra.mxu0 0.0
        %918 = vmatprep.subr.mxu0 0.0
        %919 = vmatpush1.xpose.msra.mxu0 0.0
        %920 = vmatprep.subr.mxu0 0.0
        %921 = vmatpush1.xpose.msra.mxu0 0.0
        %922 = vmatprep.subr.mxu0 0.0
        %923 = vmatpush1.xpose.msra.mxu0 0.0
        %924 = vmatprep.subr.mxu0 0.0
        %925 = vmatpush1.xpose.msra.mxu0 0.0
        %926 = vmatprep.subr.mxu0 0.0
        %927 = vmatpush1.xpose.msra.mxu0 0.0
        %928 = vmatprep.mubr.f32.mxu0 0.0
        %v929 = vand.u32 %v751, 4294901760
        %930 = vmatmul.mubr.f32.gmra.mrb[0].mxu0 %v929
        %v931 = vpop.f32.mrb[0].mxu0
        %v932 = vadd.f32 %v841, %v931
        %v933 = vpop.f32.mrb[0].mxu0
        %934 = vdwg.mxu0
        %935 = vmatprep.subr.mxu0 0.0
        %v936 = vand.u32 %v754, 4294901760
        %v937 = vsub.f32 %v754, %v936
        %938 = vmatpush1.xpose.msra.mxu0 %v937
        %939 = vmatprep.subr.mxu0 0.0
        %v940 = vand.u32 %v757, 4294901760
        %v941 = vsub.f32 %v757, %v940
        %942 = vmatpush1.xpose.msra.mxu0 %v941
        %943 = vmatprep.subr.mxu0 0.0
        %v944 = vand.u32 %v760, 4294901760
        %v945 = vsub.f32 %v760, %v944
        %946 = vmatpush1.xpose.msra.mxu0 %v945
        %947 = vmatprep.subr.mxu0 0.0
        %v948 = vand.u32 %v763, 4294901760
        %v949 = vsub.f32 %v763, %v948
        %950 = vmatpush1.xpose.msra.mxu0 %v949
        %951 = vmatprep.subr.mxu0 0.0
        %952 = vmatpush1.xpose.msra.mxu0 0.0
        %953 = vmatprep.subr.mxu0 0.0
        %954 = vmatpush1.xpose.msra.mxu0 0.0
        %955 = vmatprep.subr.mxu0 0.0
        %956 = vmatpush1.xpose.msra.mxu0 0.0
        %957 = vmatprep.subr.mxu0 0.0
        %958 = vmatpush1.xpose.msra.mxu0 0.0
        %959 = vmatprep.subr.mxu0 0.0
        %960 = vmatpush1.xpose.msra.mxu0 0.0
        %961 = vmatprep.subr.mxu0 0.0
        %962 = vmatpush1.xpose.msra.mxu0 0.0
        %963 = vmatprep.subr.mxu0 0.0
        %964 = vmatpush1.xpose.msra.mxu0 0.0
        %965 = vmatprep.subr.mxu0 0.0
        %966 = vmatpush1.xpose.msra.mxu0 0.0
        %967 = vmatprep.subr.mxu0 0.0
        %968 = vmatpush1.xpose.msra.mxu0 0.0
        %969 = vmatprep.subr.mxu0 0.0
        %970 = vmatpush1.xpose.msra.mxu0 0.0
        %971 = vmatprep.subr.mxu0 0.0
        %972 = vmatpush1.xpose.msra.mxu0 0.0
        %973 = vmatprep.subr.mxu0 0.0
        %974 = vmatpush1.xpose.msra.mxu0 0.0
        %975 = vmatprep.subr.mxu0 0.0
        %976 = vmatpush1.xpose.msra.mxu0 0.0
        %977 = vmatprep.subr.mxu0 0.0
        %978 = vmatpush1.xpose.msra.mxu0 0.0
        %979 = vmatprep.subr.mxu0 0.0
        %980 = vmatpush1.xpose.msra.mxu0 0.0
        %981 = vmatprep.subr.mxu0 0.0
        %982 = vmatpush1.xpose.msra.mxu0 0.0
        %983 = vmatprep.subr.mxu0 0.0
        %984 = vmatpush1.xpose.msra.mxu0 0.0
        %985 = vmatprep.subr.mxu0 0.0
        %986 = vmatpush1.xpose.msra.mxu0 0.0
        %987 = vmatprep.subr.mxu0 0.0
        %988 = vmatpush1.xpose.msra.mxu0 0.0
        %989 = vmatprep.subr.mxu0 0.0
        %990 = vmatpush1.xpose.msra.mxu0 0.0
        %991 = vmatprep.subr.mxu0 0.0
        %992 = vmatpush1.xpose.msra.mxu0 0.0
        %993 = vmatprep.subr.mxu0 0.0
        %994 = vmatpush1.xpose.msra.mxu0 0.0
        %995 = vmatprep.subr.mxu0 0.0
        %996 = vmatpush1.xpose.msra.mxu0 0.0
        %997 = vmatprep.subr.mxu0 0.0
        %998 = vmatpush1.xpose.msra.mxu0 0.0
        %999 = vmatprep.subr.mxu0 0.0
        %1000 = vmatpush1.xpose.msra.mxu0 0.0
        %1001 = vmatprep.subr.mxu0 0.0
        %1002 = vmatpush1.xpose.msra.mxu0 0.0
        %1003 = vmatprep.subr.mxu0 0.0
        %1004 = vmatpush1.xpose.msra.mxu0 0.0
        %1005 = vmatprep.subr.mxu0 0.0
        %1006 = vmatpush1.xpose.msra.mxu0 0.0
        %1007 = vmatprep.mubr.f32.mxu0 0.0
        %v1008 = vand.u32 %v751, 4294901760
        %v1009 = vsub.f32 %v751, %v1008
        %1010 = vmatmul.mubr.f32.gmra.mrb[0].mxu0 %v1009
        %v1011 = vpop.f32.mrb[0].mxu0
        %v1012 = vadd.f32 %v932, %v1011
        %v1013 = vpop.f32.mrb[0].mxu0
        %1014 = vdwg.mxu0
        %1015 = vmatprep.subr.mxu0 0.0
        %v1016 = vand.u32 %v754, 4294901760
        %1017 = vmatpush1.xpose.msra.mxu0 %v1016
        %1018 = vmatprep.subr.mxu0 0.0
        %v1019 = vand.u32 %v757, 4294901760
        %1020 = vmatpush1.xpose.msra.mxu0 %v1019
        %1021 = vmatprep.subr.mxu0 0.0
        %v1022 = vand.u32 %v760, 4294901760
        %1023 = vmatpush1.xpose.msra.mxu0 %v1022
        %1024 = vmatprep.subr.mxu0 0.0
        %v1025 = vand.u32 %v763, 4294901760
        %1026 = vmatpush1.xpose.msra.mxu0 %v1025
        %1027 = vmatprep.subr.mxu0 0.0
        %1028 = vmatpush1.xpose.msra.mxu0 0.0
        %1029 = vmatprep.subr.mxu0 0.0
        %1030 = vmatpush1.xpose.msra.mxu0 0.0
        %1031 = vmatprep.subr.mxu0 0.0
        %1032 = vmatpush1.xpose.msra.mxu0 0.0
        %1033 = vmatprep.subr.mxu0 0.0
        %1034 = vmatpush1.xpose.msra.mxu0 0.0
        %1035 = vmatprep.subr.mxu0 0.0
        %1036 = vmatpush1.xpose.msra.mxu0 0.0
        %1037 = vmatprep.subr.mxu0 0.0
        %1038 = vmatpush1.xpose.msra.mxu0 0.0
        %1039 = vmatprep.subr.mxu0 0.0
        %1040 = vmatpush1.xpose.msra.mxu0 0.0
        %1041 = vmatprep.subr.mxu0 0.0
        %1042 = vmatpush1.xpose.msra.mxu0 0.0
        %1043 = vmatprep.subr.mxu0 0.0
        %1044 = vmatpush1.xpose.msra.mxu0 0.0
        %1045 = vmatprep.subr.mxu0 0.0
        %1046 = vmatpush1.xpose.msra.mxu0 0.0
        %1047 = vmatprep.subr.mxu0 0.0
        %1048 = vmatpush1.xpose.msra.mxu0 0.0
        %1049 = vmatprep.subr.mxu0 0.0
        %1050 = vmatpush1.xpose.msra.mxu0 0.0
        %1051 = vmatprep.subr.mxu0 0.0
        %1052 = vmatpush1.xpose.msra.mxu0 0.0
        %1053 = vmatprep.subr.mxu0 0.0
        %1054 = vmatpush1.xpose.msra.mxu0 0.0
        %1055 = vmatprep.subr.mxu0 0.0
        %1056 = vmatpush1.xpose.msra.mxu0 0.0
        %1057 = vmatprep.subr.mxu0 0.0
        %1058 = vmatpush1.xpose.msra.mxu0 0.0
        %1059 = vmatprep.subr.mxu0 0.0
        %1060 = vmatpush1.xpose.msra.mxu0 0.0
        %1061 = vmatprep.subr.mxu0 0.0
        %1062 = vmatpush1.xpose.msra.mxu0 0.0
        %1063 = vmatprep.subr.mxu0 0.0
        %1064 = vmatpush1.xpose.msra.mxu0 0.0
        %1065 = vmatprep.subr.mxu0 0.0
        %1066 = vmatpush1.xpose.msra.mxu0 0.0
        %1067 = vmatprep.subr.mxu0 0.0
        %1068 = vmatpush1.xpose.msra.mxu0 0.0
        %1069 = vmatprep.subr.mxu0 0.0
        %1070 = vmatpush1.xpose.msra.mxu0 0.0
        %1071 = vmatprep.subr.mxu0 0.0
        %1072 = vmatpush1.xpose.msra.mxu0 0.0
        %1073 = vmatprep.subr.mxu0 0.0
        %1074 = vmatpush1.xpose.msra.mxu0 0.0
        %1075 = vmatprep.subr.mxu0 0.0
        %1076 = vmatpush1.xpose.msra.mxu0 0.0
        %1077 = vmatprep.subr.mxu0 0.0
        %1078 = vmatpush1.xpose.msra.mxu0 0.0
        %1079 = vmatprep.subr.mxu0 0.0
        %1080 = vmatpush1.xpose.msra.mxu0 0.0
        %1081 = vmatprep.subr.mxu0 0.0
        %1082 = vmatpush1.xpose.msra.mxu0 0.0
        %1083 = vmatprep.mubr.f32.mxu0 0.0
        %v1084 = vand.u32 %v751, 4294901760
        %v1085 = vsub.f32 %v751, %v1084
        %v1086 = vand.u32 %v1085, 4294901760
        %1087 = vmatmul.mubr.f32.gmra.mrb[0].mxu0 %v1086
        %v1088 = vpop.f32.mrb[0].mxu0
        %v1089 = vadd.f32 %v1012, %v1088
        %v1090 = vpop.f32.mrb[0].mxu0
        %1091 = vdwg.mxu0
        %1092 = vmatprep.subr.mxu0 0.0
        %v1093 = vand.u32 %v754, 4294901760
        %v1094 = vsub.f32 %v754, %v1093
        %v1095 = vand.u32 %v1094, 4294901760
        %1096 = vmatpush1.xpose.msra.mxu0 %v1095
        %1097 = vmatprep.subr.mxu0 0.0
        %v1098 = vand.u32 %v757, 4294901760
        %v1099 = vsub.f32 %v757, %v1098
        %v1100 = vand.u32 %v1099, 4294901760
        %1101 = vmatpush1.xpose.msra.mxu0 %v1100
        %1102 = vmatprep.subr.mxu0 0.0
        %v1103 = vand.u32 %v760, 4294901760
        %v1104 = vsub.f32 %v760, %v1103
        %v1105 = vand.u32 %v1104, 4294901760
        %1106 = vmatpush1.xpose.msra.mxu0 %v1105
        %1107 = vmatprep.subr.mxu0 0.0
        %v1108 = vand.u32 %v763, 4294901760
        %v1109 = vsub.f32 %v763, %v1108
        %v1110 = vand.u32 %v1109, 4294901760
        %1111 = vmatpush1.xpose.msra.mxu0 %v1110
        %1112 = vmatprep.subr.mxu0 0.0
        %1113 = vmatpush1.xpose.msra.mxu0 0.0
        %1114 = vmatprep.subr.mxu0 0.0
        %1115 = vmatpush1.xpose.msra.mxu0 0.0
        %1116 = vmatprep.subr.mxu0 0.0
        %1117 = vmatpush1.xpose.msra.mxu0 0.0
        %1118 = vmatprep.subr.mxu0 0.0
        %1119 = vmatpush1.xpose.msra.mxu0 0.0
        %1120 = vmatprep.subr.mxu0 0.0
        %1121 = vmatpush1.xpose.msra.mxu0 0.0
        %1122 = vmatprep.subr.mxu0 0.0
        %1123 = vmatpush1.xpose.msra.mxu0 0.0
        %1124 = vmatprep.subr.mxu0 0.0
        %1125 = vmatpush1.xpose.msra.mxu0 0.0
        %1126 = vmatprep.subr.mxu0 0.0
        %1127 = vmatpush1.xpose.msra.mxu0 0.0
        %1128 = vmatprep.subr.mxu0 0.0
        %1129 = vmatpush1.xpose.msra.mxu0 0.0
        %1130 = vmatprep.subr.mxu0 0.0
        %1131 = vmatpush1.xpose.msra.mxu0 0.0
        %1132 = vmatprep.subr.mxu0 0.0
        %1133 = vmatpush1.xpose.msra.mxu0 0.0
        %1134 = vmatprep.subr.mxu0 0.0
        %1135 = vmatpush1.xpose.msra.mxu0 0.0
        %1136 = vmatprep.subr.mxu0 0.0
        %1137 = vmatpush1.xpose.msra.mxu0 0.0
        %1138 = vmatprep.subr.mxu0 0.0
        %1139 = vmatpush1.xpose.msra.mxu0 0.0
        %1140 = vmatprep.subr.mxu0 0.0
        %1141 = vmatpush1.xpose.msra.mxu0 0.0
        %1142 = vmatprep.subr.mxu0 0.0
        %1143 = vmatpush1.xpose.msra.mxu0 0.0
        %1144 = vmatprep.subr.mxu0 0.0
        %1145 = vmatpush1.xpose.msra.mxu0 0.0
        %1146 = vmatprep.subr.mxu0 0.0
        %1147 = vmatpush1.xpose.msra.mxu0 0.0
        %1148 = vmatprep.subr.mxu0 0.0
        %1149 = vmatpush1.xpose.msra.mxu0 0.0
        %1150 = vmatprep.subr.mxu0 0.0
        %1151 = vmatpush1.xpose.msra.mxu0 0.0
        %1152 = vmatprep.subr.mxu0 0.0
        %1153 = vmatpush1.xpose.msra.mxu0 0.0
        %1154 = vmatprep.subr.mxu0 0.0
        %1155 = vmatpush1.xpose.msra.mxu0 0.0
        %1156 = vmatprep.subr.mxu0 0.0
        %1157 = vmatpush1.xpose.msra.mxu0 0.0
        %1158 = vmatprep.subr.mxu0 0.0
        %1159 = vmatpush1.xpose.msra.mxu0 0.0
        %1160 = vmatprep.subr.mxu0 0.0
        %1161 = vmatpush1.xpose.msra.mxu0 0.0
        %1162 = vmatprep.subr.mxu0 0.0
        %1163 = vmatpush1.xpose.msra.mxu0 0.0
        %1164 = vmatprep.subr.mxu0 0.0
        %1165 = vmatpush1.xpose.msra.mxu0 0.0
        %1166 = vmatprep.subr.mxu0 0.0
        %1167 = vmatpush1.xpose.msra.mxu0 0.0
        %1168 = vmatprep.mubr.f32.mxu0 0.0
        %v1169 = vand.u32 %v751, 4294901760
        %1170 = vmatmul.mubr.f32.gmra.mrb[0].mxu0 %v1169
        %v1171 = vpop.f32.mrb[0].mxu0
        %v1172 = vadd.f32 %v1089, %v1171
        %v1173 = vpop.f32.mrb[0].mxu0
        %1174 = vdwg.mxu0
        %1175 = vmatprep.subr.mxu0 0.0
        %v1176 = vand.u32 %v754, 4294901760
        %1177 = vmatpush1.xpose.msra.mxu0 %v1176
        %1178 = vmatprep.subr.mxu0 0.0
        %v1179 = vand.u32 %v757, 4294901760
        %1180 = vmatpush1.xpose.msra.mxu0 %v1179
        %1181 = vmatprep.subr.mxu0 0.0
        %v1182 = vand.u32 %v760, 4294901760
        %1183 = vmatpush1.xpose.msra.mxu0 %v1182
        %1184 = vmatprep.subr.mxu0 0.0
        %v1185 = vand.u32 %v763, 4294901760
        %1186 = vmatpush1.xpose.msra.mxu0 %v1185
        %1187 = vmatprep.subr.mxu0 0.0
        %1188 = vmatpush1.xpose.msra.mxu0 0.0
        %1189 = vmatprep.subr.mxu0 0.0
        %1190 = vmatpush1.xpose.msra.mxu0 0.0
        %1191 = vmatprep.subr.mxu0 0.0
        %1192 = vmatpush1.xpose.msra.mxu0 0.0
        %1193 = vmatprep.subr.mxu0 0.0
        %1194 = vmatpush1.xpose.msra.mxu0 0.0
        %1195 = vmatprep.subr.mxu0 0.0
        %1196 = vmatpush1.xpose.msra.mxu0 0.0
        %1197 = vmatprep.subr.mxu0 0.0
        %1198 = vmatpush1.xpose.msra.mxu0 0.0
        %1199 = vmatprep.subr.mxu0 0.0
        %1200 = vmatpush1.xpose.msra.mxu0 0.0
        %1201 = vmatprep.subr.mxu0 0.0
        %1202 = vmatpush1.xpose.msra.mxu0 0.0
        %1203 = vmatprep.subr.mxu0 0.0
        %1204 = vmatpush1.xpose.msra.mxu0 0.0
        %1205 = vmatprep.subr.mxu0 0.0
        %1206 = vmatpush1.xpose.msra.mxu0 0.0
        %1207 = vmatprep.subr.mxu0 0.0
        %1208 = vmatpush1.xpose.msra.mxu0 0.0
        %1209 = vmatprep.subr.mxu0 0.0
        %1210 = vmatpush1.xpose.msra.mxu0 0.0
        %1211 = vmatprep.subr.mxu0 0.0
        %1212 = vmatpush1.xpose.msra.mxu0 0.0
        %1213 = vmatprep.subr.mxu0 0.0
        %1214 = vmatpush1.xpose.msra.mxu0 0.0
        %1215 = vmatprep.subr.mxu0 0.0
        %1216 = vmatpush1.xpose.msra.mxu0 0.0
        %1217 = vmatprep.subr.mxu0 0.0
        %1218 = vmatpush1.xpose.msra.mxu0 0.0
        %1219 = vmatprep.subr.mxu0 0.0
        %1220 = vmatpush1.xpose.msra.mxu0 0.0
        %1221 = vmatprep.subr.mxu0 0.0
        %1222 = vmatpush1.xpose.msra.mxu0 0.0
        %1223 = vmatprep.subr.mxu0 0.0
        %1224 = vmatpush1.xpose.msra.mxu0 0.0
        %1225 = vmatprep.subr.mxu0 0.0
        %1226 = vmatpush1.xpose.msra.mxu0 0.0
        %1227 = vmatprep.subr.mxu0 0.0
        %1228 = vmatpush1.xpose.msra.mxu0 0.0
        %1229 = vmatprep.subr.mxu0 0.0
        %1230 = vmatpush1.xpose.msra.mxu0 0.0
        %1231 = vmatprep.subr.mxu0 0.0
        %1232 = vmatpush1.xpose.msra.mxu0 0.0
        %1233 = vmatprep.subr.mxu0 0.0
        %1234 = vmatpush1.xpose.msra.mxu0 0.0
        %1235 = vmatprep.subr.mxu0 0.0
        %1236 = vmatpush1.xpose.msra.mxu0 0.0
        %1237 = vmatprep.subr.mxu0 0.0
        %1238 = vmatpush1.xpose.msra.mxu0 0.0
        %1239 = vmatprep.subr.mxu0 0.0
        %1240 = vmatpush1.xpose.msra.mxu0 0.0
        %1241 = vmatprep.subr.mxu0 0.0
        %1242 = vmatpush1.xpose.msra.mxu0 0.0
        %1243 = vmatprep.mubr.f32.mxu0 0.0
        %v1244 = vand.u32 %v751, 4294901760
        %1245 = vmatmul.mubr.f32.gmra.mrb[0].mxu0 %v1244
        %v1246 = vpop.f32.mrb[0].mxu0
        %v1247 = vadd.f32 %v1172, %v1246
        %v1248 = vpop.f32.mrb[0].mxu0
        %1249 = vdwg.mxu0
        %v1250 = vlaneseq
        %v1251 = vshrl.u32 %v1250, 7
        %v1252 = vsub.s32 0, %v1251
        %v1253 = vrot.slane %v1247, %v1252
        %v1254 = vsub.f32 %v246, %v1253
        %v1255 = vmul.f32 %v1254, %v1254
        %v1256 = vsel %vm247, %v1255, 0.0
        %v1257 = vrot.slane %v1256, 4
        %v1258 = vadd.f32 %v1256, %v1257
        %v1259 = vrot.slane %v1258, 2
        %v1260 = vadd.f32 %v1258, %v1259
        %v1261 = vrot.slane %v1260, 1
        %v1262 = vadd.f32 %v1260, %v1261
        %v1264 = vsel %vm247, %v1262, 0
        %1266 = vmatprep.subr.mxu0 0.0
        %v1267 = vand.u32 %v255, 4294901760
        %1268 = vmatpush1.msra.mxu0 %v1267
        %1269 = vmatprep.subr.mxu0 0.0
        %v1270 = vand.u32 %v256, 4294901760
        %1271 = vmatpush1.msra.mxu0 %v1270
        %1272 = vmatprep.subr.mxu0 0.0
        %v1273 = vand.u32 %v257, 4294901760
        %1274 = vmatpush1.msra.mxu0 %v1273
        %1275 = vmatprep.subr.mxu0 0.0
        %v1276 = vand.u32 %v258, 4294901760
        %1277 = vmatpush1.msra.mxu0 %v1276
        %1278 = vmatprep.subr.mxu0 0.0
        %1279 = vmatpush1.msra.mxu0 0.0
        %1280 = vmatprep.subr.mxu0 0.0
        %1281 = vmatpush1.msra.mxu0 0.0
        %1282 = vmatprep.subr.mxu0 0.0
        %1283 = vmatpush1.msra.mxu0 0.0
        %1284 = vmatprep.subr.mxu0 0.0
        %1285 = vmatpush1.msra.mxu0 0.0
        %1286 = vmatprep.subr.mxu0 0.0
        %1287 = vmatpush1.msra.mxu0 0.0
        %1288 = vmatprep.subr.mxu0 0.0
        %1289 = vmatpush1.msra.mxu0 0.0
        %1290 = vmatprep.subr.mxu0 0.0
        %1291 = vmatpush1.msra.mxu0 0.0
        %1292 = vmatprep.subr.mxu0 0.0
        %1293 = vmatpush1.msra.mxu0 0.0
        %1294 = vmatprep.subr.mxu0 0.0
        %1295 = vmatpush1.msra.mxu0 0.0
        %1296 = vmatprep.subr.mxu0 0.0
        %1297 = vmatpush1.msra.mxu0 0.0
        %1298 = vmatprep.subr.mxu0 0.0
        %1299 = vmatpush1.msra.mxu0 0.0
        %1300 = vmatprep.subr.mxu0 0.0
        %1301 = vmatpush1.msra.mxu0 0.0
        %1302 = vmatprep.subr.mxu0 0.0
        %1303 = vmatpush1.msra.mxu0 0.0
        %1304 = vmatprep.subr.mxu0 0.0
        %1305 = vmatpush1.msra.mxu0 0.0
        %1306 = vmatprep.subr.mxu0 0.0
        %1307 = vmatpush1.msra.mxu0 0.0
        %1308 = vmatprep.subr.mxu0 0.0
        %1309 = vmatpush1.msra.mxu0 0.0
        %1310 = vmatprep.subr.mxu0 0.0
        %1311 = vmatpush1.msra.mxu0 0.0
        %1312 = vmatprep.subr.mxu0 0.0
        %1313 = vmatpush1.msra.mxu0 0.0
        %1314 = vmatprep.subr.mxu0 0.0
        %1315 = vmatpush1.msra.mxu0 0.0
        %1316 = vmatprep.subr.mxu0 0.0
        %1317 = vmatpush1.msra.mxu0 0.0
        %1318 = vmatprep.subr.mxu0 0.0
        %1319 = vmatpush1.msra.mxu0 0.0
        %1320 = vmatprep.subr.mxu0 0.0
        %1321 = vmatpush1.msra.mxu0 0.0
        %1322 = vmatprep.subr.mxu0 0.0
        %1323 = vmatpush1.msra.mxu0 0.0
        %1324 = vmatprep.subr.mxu0 0.0
        %1325 = vmatpush1.msra.mxu0 0.0
        %1326 = vmatprep.subr.mxu0 0.0
        %1327 = vmatpush1.msra.mxu0 0.0
        %1328 = vmatprep.subr.mxu0 0.0
        %1329 = vmatpush1.msra.mxu0 0.0
        %1330 = vmatprep.subr.mxu0 0.0
        %1331 = vmatpush1.msra.mxu0 0.0
        %1332 = vmatprep.subr.mxu0 0.0
        %1333 = vmatpush1.msra.mxu0 0.0
        %1334 = vmatprep.mubr.f32.mxu0 0.0
        %v1335 = vand.u32 %v1264, 4294901760
        %v1336 = vsub.f32 %v1264, %v1335
        %v1337 = vand.u32 %v1336, 4294901760
        %v1338 = vsub.f32 %v1336, %v1337
        %v1339 = vand.u32 %v1338, 4294901760
        %1340 = vmatmul.mubr.f32.gmra.mrb[0].mxu0 %v1339
        %v1341 = vpop.f32.mrb[0].mxu0
        %v1342 = vadd.f32 0.0, %v1341
        %v1343 = vpop.f32.mrb[0].mxu0
        %1344 = vdwg.mxu0
        %1345 = vmatprep.subr.mxu0 0.0
        %v1346 = vand.u32 %v255, 4294901760
        %v1347 = vsub.f32 %v255, %v1346
        %v1348 = vand.u32 %v1347, 4294901760
        %v1349 = vsub.f32 %v1347, %v1348
        %v1350 = vand.u32 %v1349, 4294901760
        %1351 = vmatpush1.msra.mxu0 %v1350
        %1352 = vmatprep.subr.mxu0 0.0
        %v1353 = vand.u32 %v256, 4294901760
        %v1354 = vsub.f32 %v256, %v1353
        %v1355 = vand.u32 %v1354, 4294901760
        %v1356 = vsub.f32 %v1354, %v1355
        %v1357 = vand.u32 %v1356, 4294901760
        %1358 = vmatpush1.msra.mxu0 %v1357
        %1359 = vmatprep.subr.mxu0 0.0
        %v1360 = vand.u32 %v257, 4294901760
        %v1361 = vsub.f32 %v257, %v1360
        %v1362 = vand.u32 %v1361, 4294901760
        %v1363 = vsub.f32 %v1361, %v1362
        %v1364 = vand.u32 %v1363, 4294901760
        %1365 = vmatpush1.msra.mxu0 %v1364
        %1366 = vmatprep.subr.mxu0 0.0
        %v1367 = vand.u32 %v258, 4294901760
        %v1368 = vsub.f32 %v258, %v1367
        %v1369 = vand.u32 %v1368, 4294901760
        %v1370 = vsub.f32 %v1368, %v1369
        %v1371 = vand.u32 %v1370, 4294901760
        %1372 = vmatpush1.msra.mxu0 %v1371
        %1373 = vmatprep.subr.mxu0 0.0
        %1374 = vmatpush1.msra.mxu0 0.0
        %1375 = vmatprep.subr.mxu0 0.0
        %1376 = vmatpush1.msra.mxu0 0.0
        %1377 = vmatprep.subr.mxu0 0.0
        %1378 = vmatpush1.msra.mxu0 0.0
        %1379 = vmatprep.subr.mxu0 0.0
        %1380 = vmatpush1.msra.mxu0 0.0
        %1381 = vmatprep.subr.mxu0 0.0
        %1382 = vmatpush1.msra.mxu0 0.0
        %1383 = vmatprep.subr.mxu0 0.0
        %1384 = vmatpush1.msra.mxu0 0.0
        %1385 = vmatprep.subr.mxu0 0.0
        %1386 = vmatpush1.msra.mxu0 0.0
        %1387 = vmatprep.subr.mxu0 0.0
        %1388 = vmatpush1.msra.mxu0 0.0
        %1389 = vmatprep.subr.mxu0 0.0
        %1390 = vmatpush1.msra.mxu0 0.0
        %1391 = vmatprep.subr.mxu0 0.0
        %1392 = vmatpush1.msra.mxu0 0.0
        %1393 = vmatprep.subr.mxu0 0.0
        %1394 = vmatpush1.msra.mxu0 0.0
        %1395 = vmatprep.subr.mxu0 0.0
        %1396 = vmatpush1.msra.mxu0 0.0
        %1397 = vmatprep.subr.mxu0 0.0
        %1398 = vmatpush1.msra.mxu0 0.0
        %1399 = vmatprep.subr.mxu0 0.0
        %1400 = vmatpush1.msra.mxu0 0.0
        %1401 = vmatprep.subr.mxu0 0.0
        %1402 = vmatpush1.msra.mxu0 0.0
        %1403 = vmatprep.subr.mxu0 0.0
        %1404 = vmatpush1.msra.mxu0 0.0
        %1405 = vmatprep.subr.mxu0 0.0
        %1406 = vmatpush1.msra.mxu0 0.0
        %1407 = vmatprep.subr.mxu0 0.0
        %1408 = vmatpush1.msra.mxu0 0.0
        %1409 = vmatprep.subr.mxu0 0.0
        %1410 = vmatpush1.msra.mxu0 0.0
        %1411 = vmatprep.subr.mxu0 0.0
        %1412 = vmatpush1.msra.mxu0 0.0
        %1413 = vmatprep.subr.mxu0 0.0
        %1414 = vmatpush1.msra.mxu0 0.0
        %1415 = vmatprep.subr.mxu0 0.0
        %1416 = vmatpush1.msra.mxu0 0.0
        %1417 = vmatprep.subr.mxu0 0.0
        %1418 = vmatpush1.msra.mxu0 0.0
        %1419 = vmatprep.subr.mxu0 0.0
        %1420 = vmatpush1.msra.mxu0 0.0
        %1421 = vmatprep.subr.mxu0 0.0
        %1422 = vmatpush1.msra.mxu0 0.0
        %1423 = vmatprep.subr.mxu0 0.0
        %1424 = vmatpush1.msra.mxu0 0.0
        %1425 = vmatprep.subr.mxu0 0.0
        %1426 = vmatpush1.msra.mxu0 0.0
        %1427 = vmatprep.subr.mxu0 0.0
        %1428 = vmatpush1.msra.mxu0 0.0
        %1429 = vmatprep.mubr.f32.mxu0 0.0
        %v1430 = vand.u32 %v1264, 4294901760
        %1431 = vmatmul.mubr.f32.gmra.mrb[0].mxu0 %v1430
        %v1432 = vpop.f32.mrb[0].mxu0
        %v1433 = vadd.f32 %v1342, %v1432
        %v1434 = vpop.f32.mrb[0].mxu0
        %1435 = vdwg.mxu0
        %1436 = vmatprep.subr.mxu0 0.0
        %v1437 = vand.u32 %v255, 4294901760
        %v1438 = vsub.f32 %v255, %v1437
        %1439 = vmatpush1.msra.mxu0 %v1438
        %1440 = vmatprep.subr.mxu0 0.0
        %v1441 = vand.u32 %v256, 4294901760
        %v1442 = vsub.f32 %v256, %v1441
        %1443 = vmatpush1.msra.mxu0 %v1442
        %1444 = vmatprep.subr.mxu0 0.0
        %v1445 = vand.u32 %v257, 4294901760
        %v1446 = vsub.f32 %v257, %v1445
        %1447 = vmatpush1.msra.mxu0 %v1446
        %1448 = vmatprep.subr.mxu0 0.0
        %v1449 = vand.u32 %v258, 4294901760
        %v1450 = vsub.f32 %v258, %v1449
        %1451 = vmatpush1.msra.mxu0 %v1450
        %1452 = vmatprep.subr.mxu0 0.0
        %1453 = vmatpush1.msra.mxu0 0.0
        %1454 = vmatprep.subr.mxu0 0.0
        %1455 = vmatpush1.msra.mxu0 0.0
        %1456 = vmatprep.subr.mxu0 0.0
        %1457 = vmatpush1.msra.mxu0 0.0
        %1458 = vmatprep.subr.mxu0 0.0
        %1459 = vmatpush1.msra.mxu0 0.0
        %1460 = vmatprep.subr.mxu0 0.0
        %1461 = vmatpush1.msra.mxu0 0.0
        %1462 = vmatprep.subr.mxu0 0.0
        %1463 = vmatpush1.msra.mxu0 0.0
        %1464 = vmatprep.subr.mxu0 0.0
        %1465 = vmatpush1.msra.mxu0 0.0
        %1466 = vmatprep.subr.mxu0 0.0
        %1467 = vmatpush1.msra.mxu0 0.0
        %1468 = vmatprep.subr.mxu0 0.0
        %1469 = vmatpush1.msra.mxu0 0.0
        %1470 = vmatprep.subr.mxu0 0.0
        %1471 = vmatpush1.msra.mxu0 0.0
        %1472 = vmatprep.subr.mxu0 0.0
        %1473 = vmatpush1.msra.mxu0 0.0
        %1474 = vmatprep.subr.mxu0 0.0
        %1475 = vmatpush1.msra.mxu0 0.0
        %1476 = vmatprep.subr.mxu0 0.0
        %1477 = vmatpush1.msra.mxu0 0.0
        %1478 = vmatprep.subr.mxu0 0.0
        %1479 = vmatpush1.msra.mxu0 0.0
        %1480 = vmatprep.subr.mxu0 0.0
        %1481 = vmatpush1.msra.mxu0 0.0
        %1482 = vmatprep.subr.mxu0 0.0
        %1483 = vmatpush1.msra.mxu0 0.0
        %1484 = vmatprep.subr.mxu0 0.0
        %1485 = vmatpush1.msra.mxu0 0.0
        %1486 = vmatprep.subr.mxu0 0.0
        %1487 = vmatpush1.msra.mxu0 0.0
        %1488 = vmatprep.subr.mxu0 0.0
        %1489 = vmatpush1.msra.mxu0 0.0
        %1490 = vmatprep.subr.mxu0 0.0
        %1491 = vmatpush1.msra.mxu0 0.0
        %1492 = vmatprep.subr.mxu0 0.0
        %1493 = vmatpush1.msra.mxu0 0.0
        %1494 = vmatprep.subr.mxu0 0.0
        %1495 = vmatpush1.msra.mxu0 0.0
        %1496 = vmatprep.subr.mxu0 0.0
        %1497 = vmatpush1.msra.mxu0 0.0
        %1498 = vmatprep.subr.mxu0 0.0
        %1499 = vmatpush1.msra.mxu0 0.0
        %1500 = vmatprep.subr.mxu0 0.0
        %1501 = vmatpush1.msra.mxu0 0.0
        %1502 = vmatprep.subr.mxu0 0.0
        %1503 = vmatpush1.msra.mxu0 0.0
        %1504 = vmatprep.subr.mxu0 0.0
        %1505 = vmatpush1.msra.mxu0 0.0
        %1506 = vmatprep.subr.mxu0 0.0
        %1507 = vmatpush1.msra.mxu0 0.0
        %1508 = vmatprep.mubr.f32.mxu0 0.0
        %v1509 = vand.u32 %v1264, 4294901760
        %v1510 = vsub.f32 %v1264, %v1509
        %1511 = vmatmul.mubr.f32.gmra.mrb[0].mxu0 %v1510
        %v1512 = vpop.f32.mrb[0].mxu0
        %v1513 = vadd.f32 %v1433, %v1512
        %v1514 = vpop.f32.mrb[0].mxu0
        %1515 = vdwg.mxu0
        %1516 = vmatprep.subr.mxu0 0.0
        %v1517 = vand.u32 %v255, 4294901760
        %1518 = vmatpush1.msra.mxu0 %v1517
        %1519 = vmatprep.subr.mxu0 0.0
        %v1520 = vand.u32 %v256, 4294901760
        %1521 = vmatpush1.msra.mxu0 %v1520
        %1522 = vmatprep.subr.mxu0 0.0
        %v1523 = vand.u32 %v257, 4294901760
        %1524 = vmatpush1.msra.mxu0 %v1523
        %1525 = vmatprep.subr.mxu0 0.0
        %v1526 = vand.u32 %v258, 4294901760
        %1527 = vmatpush1.msra.mxu0 %v1526
        %1528 = vmatprep.subr.mxu0 0.0
        %1529 = vmatpush1.msra.mxu0 0.0
        %1530 = vmatprep.subr.mxu0 0.0
        %1531 = vmatpush1.msra.mxu0 0.0
        %1532 = vmatprep.subr.mxu0 0.0
        %1533 = vmatpush1.msra.mxu0 0.0
        %1534 = vmatprep.subr.mxu0 0.0
        %1535 = vmatpush1.msra.mxu0 0.0
        %1536 = vmatprep.subr.mxu0 0.0
        %1537 = vmatpush1.msra.mxu0 0.0
        %1538 = vmatprep.subr.mxu0 0.0
        %1539 = vmatpush1.msra.mxu0 0.0
        %1540 = vmatprep.subr.mxu0 0.0
        %1541 = vmatpush1.msra.mxu0 0.0
        %1542 = vmatprep.subr.mxu0 0.0
        %1543 = vmatpush1.msra.mxu0 0.0
        %1544 = vmatprep.subr.mxu0 0.0
        %1545 = vmatpush1.msra.mxu0 0.0
        %1546 = vmatprep.subr.mxu0 0.0
        %1547 = vmatpush1.msra.mxu0 0.0
        %1548 = vmatprep.subr.mxu0 0.0
        %1549 = vmatpush1.msra.mxu0 0.0
        %1550 = vmatprep.subr.mxu0 0.0
        %1551 = vmatpush1.msra.mxu0 0.0
        %1552 = vmatprep.subr.mxu0 0.0
        %1553 = vmatpush1.msra.mxu0 0.0
        %1554 = vmatprep.subr.mxu0 0.0
        %1555 = vmatpush1.msra.mxu0 0.0
        %1556 = vmatprep.subr.mxu0 0.0
        %1557 = vmatpush1.msra.mxu0 0.0
        %1558 = vmatprep.subr.mxu0 0.0
        %1559 = vmatpush1.msra.mxu0 0.0
        %1560 = vmatprep.subr.mxu0 0.0
        %1561 = vmatpush1.msra.mxu0 0.0
        %1562 = vmatprep.subr.mxu0 0.0
        %1563 = vmatpush1.msra.mxu0 0.0
        %1564 = vmatprep.subr.mxu0 0.0
        %1565 = vmatpush1.msra.mxu0 0.0
        %1566 = vmatprep.subr.mxu0 0.0
        %1567 = vmatpush1.msra.mxu0 0.0
        %1568 = vmatprep.subr.mxu0 0.0
        %1569 = vmatpush1.msra.mxu0 0.0
        %1570 = vmatprep.subr.mxu0 0.0
        %1571 = vmatpush1.msra.mxu0 0.0
        %1572 = vmatprep.subr.mxu0 0.0
        %1573 = vmatpush1.msra.mxu0 0.0
        %1574 = vmatprep.subr.mxu0 0.0
        %1575 = vmatpush1.msra.mxu0 0.0
        %1576 = vmatprep.subr.mxu0 0.0
        %1577 = vmatpush1.msra.mxu0 0.0
        %1578 = vmatprep.subr.mxu0 0.0
        %1579 = vmatpush1.msra.mxu0 0.0
        %1580 = vmatprep.subr.mxu0 0.0
        %1581 = vmatpush1.msra.mxu0 0.0
        %1582 = vmatprep.subr.mxu0 0.0
        %1583 = vmatpush1.msra.mxu0 0.0
        %1584 = vmatprep.mubr.f32.mxu0 0.0
        %v1585 = vand.u32 %v1264, 4294901760
        %v1586 = vsub.f32 %v1264, %v1585
        %v1587 = vand.u32 %v1586, 4294901760
        %1588 = vmatmul.mubr.f32.gmra.mrb[0].mxu0 %v1587
        %v1589 = vpop.f32.mrb[0].mxu0
        %v1590 = vadd.f32 %v1513, %v1589
        %v1591 = vpop.f32.mrb[0].mxu0
        %1592 = vdwg.mxu0
        %1593 = vmatprep.subr.mxu0 0.0
        %v1594 = vand.u32 %v255, 4294901760
        %v1595 = vsub.f32 %v255, %v1594
        %v1596 = vand.u32 %v1595, 4294901760
        %1597 = vmatpush1.msra.mxu0 %v1596
        %1598 = vmatprep.subr.mxu0 0.0
        %v1599 = vand.u32 %v256, 4294901760
        %v1600 = vsub.f32 %v256, %v1599
        %v1601 = vand.u32 %v1600, 4294901760
        %1602 = vmatpush1.msra.mxu0 %v1601
        %1603 = vmatprep.subr.mxu0 0.0
        %v1604 = vand.u32 %v257, 4294901760
        %v1605 = vsub.f32 %v257, %v1604
        %v1606 = vand.u32 %v1605, 4294901760
        %1607 = vmatpush1.msra.mxu0 %v1606
        %1608 = vmatprep.subr.mxu0 0.0
        %v1609 = vand.u32 %v258, 4294901760
        %v1610 = vsub.f32 %v258, %v1609
        %v1611 = vand.u32 %v1610, 4294901760
        %1612 = vmatpush1.msra.mxu0 %v1611
        %1613 = vmatprep.subr.mxu0 0.0
        %1614 = vmatpush1.msra.mxu0 0.0
        %1615 = vmatprep.subr.mxu0 0.0
        %1616 = vmatpush1.msra.mxu0 0.0
        %1617 = vmatprep.subr.mxu0 0.0
        %1618 = vmatpush1.msra.mxu0 0.0
        %1619 = vmatprep.subr.mxu0 0.0
        %1620 = vmatpush1.msra.mxu0 0.0
        %1621 = vmatprep.subr.mxu0 0.0
        %1622 = vmatpush1.msra.mxu0 0.0
        %1623 = vmatprep.subr.mxu0 0.0
        %1624 = vmatpush1.msra.mxu0 0.0
        %1625 = vmatprep.subr.mxu0 0.0
        %1626 = vmatpush1.msra.mxu0 0.0
        %1627 = vmatprep.subr.mxu0 0.0
        %1628 = vmatpush1.msra.mxu0 0.0
        %1629 = vmatprep.subr.mxu0 0.0
        %1630 = vmatpush1.msra.mxu0 0.0
        %1631 = vmatprep.subr.mxu0 0.0
        %1632 = vmatpush1.msra.mxu0 0.0
        %1633 = vmatprep.subr.mxu0 0.0
        %1634 = vmatpush1.msra.mxu0 0.0
        %1635 = vmatprep.subr.mxu0 0.0
        %1636 = vmatpush1.msra.mxu0 0.0
        %1637 = vmatprep.subr.mxu0 0.0
        %1638 = vmatpush1.msra.mxu0 0.0
        %1639 = vmatprep.subr.mxu0 0.0
        %1640 = vmatpush1.msra.mxu0 0.0
        %1641 = vmatprep.subr.mxu0 0.0
        %1642 = vmatpush1.msra.mxu0 0.0
        %1643 = vmatprep.subr.mxu0 0.0
        %1644 = vmatpush1.msra.mxu0 0.0
        %1645 = vmatprep.subr.mxu0 0.0
        %1646 = vmatpush1.msra.mxu0 0.0
        %1647 = vmatprep.subr.mxu0 0.0
        %1648 = vmatpush1.msra.mxu0 0.0
        %1649 = vmatprep.subr.mxu0 0.0
        %1650 = vmatpush1.msra.mxu0 0.0
        %1651 = vmatprep.subr.mxu0 0.0
        %1652 = vmatpush1.msra.mxu0 0.0
        %1653 = vmatprep.subr.mxu0 0.0
        %1654 = vmatpush1.msra.mxu0 0.0
        %1655 = vmatprep.subr.mxu0 0.0
        %1656 = vmatpush1.msra.mxu0 0.0
        %1657 = vmatprep.subr.mxu0 0.0
        %1658 = vmatpush1.msra.mxu0 0.0
        %1659 = vmatprep.subr.mxu0 0.0
        %1660 = vmatpush1.msra.mxu0 0.0
        %1661 = vmatprep.subr.mxu0 0.0
        %1662 = vmatpush1.msra.mxu0 0.0
        %1663 = vmatprep.subr.mxu0 0.0
        %1664 = vmatpush1.msra.mxu0 0.0
        %1665 = vmatprep.subr.mxu0 0.0
        %1666 = vmatpush1.msra.mxu0 0.0
        %1667 = vmatprep.subr.mxu0 0.0
        %1668 = vmatpush1.msra.mxu0 0.0
        %1669 = vmatprep.mubr.f32.mxu0 0.0
        %v1670 = vand.u32 %v1264, 4294901760
        %1671 = vmatmul.mubr.f32.gmra.mrb[0].mxu0 %v1670
        %v1672 = vpop.f32.mrb[0].mxu0
        %v1673 = vadd.f32 %v1590, %v1672
        %v1674 = vpop.f32.mrb[0].mxu0
        %1675 = vdwg.mxu0
        %1676 = vmatprep.subr.mxu0 0.0
        %v1677 = vand.u32 %v255, 4294901760
        %1678 = vmatpush1.msra.mxu0 %v1677
        %1679 = vmatprep.subr.mxu0 0.0
        %v1680 = vand.u32 %v256, 4294901760
        %1681 = vmatpush1.msra.mxu0 %v1680
        %1682 = vmatprep.subr.mxu0 0.0
        %v1683 = vand.u32 %v257, 4294901760
        %1684 = vmatpush1.msra.mxu0 %v1683
        %1685 = vmatprep.subr.mxu0 0.0
        %v1686 = vand.u32 %v258, 4294901760
        %1687 = vmatpush1.msra.mxu0 %v1686
        %1688 = vmatprep.subr.mxu0 0.0
        %1689 = vmatpush1.msra.mxu0 0.0
        %1690 = vmatprep.subr.mxu0 0.0
        %1691 = vmatpush1.msra.mxu0 0.0
        %1692 = vmatprep.subr.mxu0 0.0
        %1693 = vmatpush1.msra.mxu0 0.0
        %1694 = vmatprep.subr.mxu0 0.0
        %1695 = vmatpush1.msra.mxu0 0.0
        %1696 = vmatprep.subr.mxu0 0.0
        %1697 = vmatpush1.msra.mxu0 0.0
        %1698 = vmatprep.subr.mxu0 0.0
        %1699 = vmatpush1.msra.mxu0 0.0
        %1700 = vmatprep.subr.mxu0 0.0
        %1701 = vmatpush1.msra.mxu0 0.0
        %1702 = vmatprep.subr.mxu0 0.0
        %1703 = vmatpush1.msra.mxu0 0.0
        %1704 = vmatprep.subr.mxu0 0.0
        %1705 = vmatpush1.msra.mxu0 0.0
        %1706 = vmatprep.subr.mxu0 0.0
        %1707 = vmatpush1.msra.mxu0 0.0
        %1708 = vmatprep.subr.mxu0 0.0
        %1709 = vmatpush1.msra.mxu0 0.0
        %1710 = vmatprep.subr.mxu0 0.0
        %1711 = vmatpush1.msra.mxu0 0.0
        %1712 = vmatprep.subr.mxu0 0.0
        %1713 = vmatpush1.msra.mxu0 0.0
        %1714 = vmatprep.subr.mxu0 0.0
        %1715 = vmatpush1.msra.mxu0 0.0
        %1716 = vmatprep.subr.mxu0 0.0
        %1717 = vmatpush1.msra.mxu0 0.0
        %1718 = vmatprep.subr.mxu0 0.0
        %1719 = vmatpush1.msra.mxu0 0.0
        %1720 = vmatprep.subr.mxu0 0.0
        %1721 = vmatpush1.msra.mxu0 0.0
        %1722 = vmatprep.subr.mxu0 0.0
        %1723 = vmatpush1.msra.mxu0 0.0
        %1724 = vmatprep.subr.mxu0 0.0
        %1725 = vmatpush1.msra.mxu0 0.0
        %1726 = vmatprep.subr.mxu0 0.0
        %1727 = vmatpush1.msra.mxu0 0.0
        %1728 = vmatprep.subr.mxu0 0.0
        %1729 = vmatpush1.msra.mxu0 0.0
        %1730 = vmatprep.subr.mxu0 0.0
        %1731 = vmatpush1.msra.mxu0 0.0
        %1732 = vmatprep.subr.mxu0 0.0
        %1733 = vmatpush1.msra.mxu0 0.0
        %1734 = vmatprep.subr.mxu0 0.0
        %1735 = vmatpush1.msra.mxu0 0.0
        %1736 = vmatprep.subr.mxu0 0.0
        %1737 = vmatpush1.msra.mxu0 0.0
        %1738 = vmatprep.subr.mxu0 0.0
        %1739 = vmatpush1.msra.mxu0 0.0
        %1740 = vmatprep.subr.mxu0 0.0
        %1741 = vmatpush1.msra.mxu0 0.0
        %1742 = vmatprep.subr.mxu0 0.0
        %1743 = vmatpush1.msra.mxu0 0.0
        %1744 = vmatprep.mubr.f32.mxu0 0.0
        %v1745 = vand.u32 %v1264, 4294901760
        %1746 = vmatmul.mubr.f32.gmra.mrb[0].mxu0 %v1745
        %v1747 = vpop.f32.mrb[0].mxu0
        %v1748 = vadd.f32 %v1673, %v1747
        %v1749 = vpop.f32.mrb[0].mxu0
        %1750 = vdwg.mxu0
        %v1751 = vmul.f32 %v1748, %v747
        %v1752 = vadd.f32 %v1751, 1e-05
        %v1753 = vrsqrt.pop %v1752
        %v1755 = vsel %vm749, %v1753, 0
        %1757 = vmatprep.subr.mxu0 0.0
        %v1758 = vand.u32 %v754, 4294901760
        %1759 = vmatpush1.xpose.msra.mxu0 %v1758
        %1760 = vmatprep.subr.mxu0 0.0
        %v1761 = vand.u32 %v757, 4294901760
        %1762 = vmatpush1.xpose.msra.mxu0 %v1761
        %1763 = vmatprep.subr.mxu0 0.0
        %v1764 = vand.u32 %v760, 4294901760
        %1765 = vmatpush1.xpose.msra.mxu0 %v1764
        %1766 = vmatprep.subr.mxu0 0.0
        %v1767 = vand.u32 %v763, 4294901760
        %1768 = vmatpush1.xpose.msra.mxu0 %v1767
        %1769 = vmatprep.subr.mxu0 0.0
        %1770 = vmatpush1.xpose.msra.mxu0 0.0
        %1771 = vmatprep.subr.mxu0 0.0
        %1772 = vmatpush1.xpose.msra.mxu0 0.0
        %1773 = vmatprep.subr.mxu0 0.0
        %1774 = vmatpush1.xpose.msra.mxu0 0.0
        %1775 = vmatprep.subr.mxu0 0.0
        %1776 = vmatpush1.xpose.msra.mxu0 0.0
        %1777 = vmatprep.subr.mxu0 0.0
        %1778 = vmatpush1.xpose.msra.mxu0 0.0
        %1779 = vmatprep.subr.mxu0 0.0
        %1780 = vmatpush1.xpose.msra.mxu0 0.0
        %1781 = vmatprep.subr.mxu0 0.0
        %1782 = vmatpush1.xpose.msra.mxu0 0.0
        %1783 = vmatprep.subr.mxu0 0.0
        %1784 = vmatpush1.xpose.msra.mxu0 0.0
        %1785 = vmatprep.subr.mxu0 0.0
        %1786 = vmatpush1.xpose.msra.mxu0 0.0
        %1787 = vmatprep.subr.mxu0 0.0
        %1788 = vmatpush1.xpose.msra.mxu0 0.0
        %1789 = vmatprep.subr.mxu0 0.0
        %1790 = vmatpush1.xpose.msra.mxu0 0.0
        %1791 = vmatprep.subr.mxu0 0.0
        %1792 = vmatpush1.xpose.msra.mxu0 0.0
        %1793 = vmatprep.subr.mxu0 0.0
        %1794 = vmatpush1.xpose.msra.mxu0 0.0
        %1795 = vmatprep.subr.mxu0 0.0
        %1796 = vmatpush1.xpose.msra.mxu0 0.0
        %1797 = vmatprep.subr.mxu0 0.0
        %1798 = vmatpush1.xpose.msra.mxu0 0.0
        %1799 = vmatprep.subr.mxu0 0.0
        %1800 = vmatpush1.xpose.msra.mxu0 0.0
        %1801 = vmatprep.subr.mxu0 0.0
        %1802 = vmatpush1.xpose.msra.mxu0 0.0
        %1803 = vmatprep.subr.mxu0 0.0
        %1804 = vmatpush1.xpose.msra.mxu0 0.0
        %1805 = vmatprep.subr.mxu0 0.0
        %1806 = vmatpush1.xpose.msra.mxu0 0.0
        %1807 = vmatprep.subr.mxu0 0.0
        %1808 = vmatpush1.xpose.msra.mxu0 0.0
        %1809 = vmatprep.subr.mxu0 0.0
        %1810 = vmatpush1.xpose.msra.mxu0 0.0
        %1811 = vmatprep.subr.mxu0 0.0
        %1812 = vmatpush1.xpose.msra.mxu0 0.0
        %1813 = vmatprep.subr.mxu0 0.0
        %1814 = vmatpush1.xpose.msra.mxu0 0.0
        %1815 = vmatprep.subr.mxu0 0.0
        %1816 = vmatpush1.xpose.msra.mxu0 0.0
        %1817 = vmatprep.subr.mxu0 0.0
        %1818 = vmatpush1.xpose.msra.mxu0 0.0
        %1819 = vmatprep.subr.mxu0 0.0
        %1820 = vmatpush1.xpose.msra.mxu0 0.0
        %1821 = vmatprep.subr.mxu0 0.0
        %1822 = vmatpush1.xpose.msra.mxu0 0.0
        %1823 = vmatprep.subr.mxu0 0.0
        %1824 = vmatpush1.xpose.msra.mxu0 0.0
        %1825 = vmatprep.mubr.f32.mxu0 0.0
        %v1826 = vand.u32 %v1755, 4294901760
        %v1827 = vsub.f32 %v1755, %v1826
        %v1828 = vand.u32 %v1827, 4294901760
        %v1829 = vsub.f32 %v1827, %v1828
        %v1830 = vand.u32 %v1829, 4294901760
        %1831 = vmatmul.mubr.f32.gmra.mrb[0].mxu0 %v1830
        %v1832 = vpop.f32.mrb[0].mxu0
        %v1833 = vadd.f32 0.0, %v1832
        %v1834 = vpop.f32.mrb[0].mxu0
        %1835 = vdwg.mxu0
        %1836 = vmatprep.subr.mxu0 0.0
        %v1837 = vand.u32 %v754, 4294901760
        %v1838 = vsub.f32 %v754, %v1837
        %v1839 = vand.u32 %v1838, 4294901760
        %v1840 = vsub.f32 %v1838, %v1839
        %v1841 = vand.u32 %v1840, 4294901760
        %1842 = vmatpush1.xpose.msra.mxu0 %v1841
        %1843 = vmatprep.subr.mxu0 0.0
        %v1844 = vand.u32 %v757, 4294901760
        %v1845 = vsub.f32 %v757, %v1844
        %v1846 = vand.u32 %v1845, 4294901760
        %v1847 = vsub.f32 %v1845, %v1846
        %v1848 = vand.u32 %v1847, 4294901760
        %1849 = vmatpush1.xpose.msra.mxu0 %v1848
        %1850 = vmatprep.subr.mxu0 0.0
        %v1851 = vand.u32 %v760, 4294901760
        %v1852 = vsub.f32 %v760, %v1851
        %v1853 = vand.u32 %v1852, 4294901760
        %v1854 = vsub.f32 %v1852, %v1853
        %v1855 = vand.u32 %v1854, 4294901760
        %1856 = vmatpush1.xpose.msra.mxu0 %v1855
        %1857 = vmatprep.subr.mxu0 0.0
        %v1858 = vand.u32 %v763, 4294901760
        %v1859 = vsub.f32 %v763, %v1858
        %v1860 = vand.u32 %v1859, 4294901760
        %v1861 = vsub.f32 %v1859, %v1860
        %v1862 = vand.u32 %v1861, 4294901760
        %1863 = vmatpush1.xpose.msra.mxu0 %v1862
        %1864 = vmatprep.subr.mxu0 0.0
        %1865 = vmatpush1.xpose.msra.mxu0 0.0
        %1866 = vmatprep.subr.mxu0 0.0
        %1867 = vmatpush1.xpose.msra.mxu0 0.0
        %1868 = vmatprep.subr.mxu0 0.0
        %1869 = vmatpush1.xpose.msra.mxu0 0.0
        %1870 = vmatprep.subr.mxu0 0.0
        %1871 = vmatpush1.xpose.msra.mxu0 0.0
        %1872 = vmatprep.subr.mxu0 0.0
        %1873 = vmatpush1.xpose.msra.mxu0 0.0
        %1874 = vmatprep.subr.mxu0 0.0
        %1875 = vmatpush1.xpose.msra.mxu0 0.0
        %1876 = vmatprep.subr.mxu0 0.0
        %1877 = vmatpush1.xpose.msra.mxu0 0.0
        %1878 = vmatprep.subr.mxu0 0.0
        %1879 = vmatpush1.xpose.msra.mxu0 0.0
        %1880 = vmatprep.subr.mxu0 0.0
        %1881 = vmatpush1.xpose.msra.mxu0 0.0
        %1882 = vmatprep.subr.mxu0 0.0
        %1883 = vmatpush1.xpose.msra.mxu0 0.0
        %1884 = vmatprep.subr.mxu0 0.0
        %1885 = vmatpush1.xpose.msra.mxu0 0.0
        %1886 = vmatprep.subr.mxu0 0.0
        %1887 = vmatpush1.xpose.msra.mxu0 0.0
        %1888 = vmatprep.subr.mxu0 0.0
        %1889 = vmatpush1.xpose.msra.mxu0 0.0
        %1890 = vmatprep.subr.mxu0 0.0
        %1891 = vmatpush1.xpose.msra.mxu0 0.0
        %1892 = vmatprep.subr.mxu0 0.0
        %1893 = vmatpush1.xpose.msra.mxu0 0.0
        %1894 = vmatprep.subr.mxu0 0.0
        %1895 = vmatpush1.xpose.msra.mxu0 0.0
        %1896 = vmatprep.subr.mxu0 0.0
        %1897 = vmatpush1.xpose.msra.mxu0 0.0
        %1898 = vmatprep.subr.mxu0 0.0
        %1899 = vmatpush1.xpose.msra.mxu0 0.0
        %1900 = vmatprep.subr.mxu0 0.0
        %1901 = vmatpush1.xpose.msra.mxu0 0.0
        %1902 = vmatprep.subr.mxu0 0.0
        %1903 = vmatpush1.xpose.msra.mxu0 0.0
        %1904 = vmatprep.subr.mxu0 0.0
        %1905 = vmatpush1.xpose.msra.mxu0 0.0
        %1906 = vmatprep.subr.mxu0 0.0
        %1907 = vmatpush1.xpose.msra.mxu0 0.0
        %1908 = vmatprep.subr.mxu0 0.0
        %1909 = vmatpush1.xpose.msra.mxu0 0.0
        %1910 = vmatprep.subr.mxu0 0.0
        %1911 = vmatpush1.xpose.msra.mxu0 0.0
        %1912 = vmatprep.subr.mxu0 0.0
        %1913 = vmatpush1.xpose.msra.mxu0 0.0
        %1914 = vmatprep.subr.mxu0 0.0
        %1915 = vmatpush1.xpose.msra.mxu0 0.0
        %1916 = vmatprep.subr.mxu0 0.0
        %1917 = vmatpush1.xpose.msra.mxu0 0.0
        %1918 = vmatprep.subr.mxu0 0.0
        %1919 = vmatpush1.xpose.msra.mxu0 0.0
        %1920 = vmatprep.mubr.f32.mxu0 0.0
        %v1921 = vand.u32 %v1755, 4294901760
        %1922 = vmatmul.mubr.f32.gmra.mrb[0].mxu0 %v1921
        %v1923 = vpop.f32.mrb[0].mxu0
        %v1924 = vadd.f32 %v1833, %v1923
        %v1925 = vpop.f32.mrb[0].mxu0
        %1926 = vdwg.mxu0
        %1927 = vmatprep.subr.mxu0 0.0
        %v1928 = vand.u32 %v754, 4294901760
        %v1929 = vsub.f32 %v754, %v1928
        %1930 = vmatpush1.xpose.msra.mxu0 %v1929
        %1931 = vmatprep.subr.mxu0 0.0
        %v1932 = vand.u32 %v757, 4294901760
        %v1933 = vsub.f32 %v757, %v1932
        %1934 = vmatpush1.xpose.msra.mxu0 %v1933
        %1935 = vmatprep.subr.mxu0 0.0
        %v1936 = vand.u32 %v760, 4294901760
        %v1937 = vsub.f32 %v760, %v1936
        %1938 = vmatpush1.xpose.msra.mxu0 %v1937
        %1939 = vmatprep.subr.mxu0 0.0
        %v1940 = vand.u32 %v763, 4294901760
        %v1941 = vsub.f32 %v763, %v1940
        %1942 = vmatpush1.xpose.msra.mxu0 %v1941
        %1943 = vmatprep.subr.mxu0 0.0
        %1944 = vmatpush1.xpose.msra.mxu0 0.0
        %1945 = vmatprep.subr.mxu0 0.0
        %1946 = vmatpush1.xpose.msra.mxu0 0.0
        %1947 = vmatprep.subr.mxu0 0.0
        %1948 = vmatpush1.xpose.msra.mxu0 0.0
        %1949 = vmatprep.subr.mxu0 0.0
        %1950 = vmatpush1.xpose.msra.mxu0 0.0
        %1951 = vmatprep.subr.mxu0 0.0
        %1952 = vmatpush1.xpose.msra.mxu0 0.0
        %1953 = vmatprep.subr.mxu0 0.0
        %1954 = vmatpush1.xpose.msra.mxu0 0.0
        %1955 = vmatprep.subr.mxu0 0.0
        %1956 = vmatpush1.xpose.msra.mxu0 0.0
        %1957 = vmatprep.subr.mxu0 0.0
        %1958 = vmatpush1.xpose.msra.mxu0 0.0
        %1959 = vmatprep.subr.mxu0 0.0
        %1960 = vmatpush1.xpose.msra.mxu0 0.0
        %1961 = vmatprep.subr.mxu0 0.0
        %1962 = vmatpush1.xpose.msra.mxu0 0.0
        %1963 = vmatprep.subr.mxu0 0.0
        %1964 = vmatpush1.xpose.msra.mxu0 0.0
        %1965 = vmatprep.subr.mxu0 0.0
        %1966 = vmatpush1.xpose.msra.mxu0 0.0
        %1967 = vmatprep.subr.mxu0 0.0
        %1968 = vmatpush1.xpose.msra.mxu0 0.0
        %1969 = vmatprep.subr.mxu0 0.0
        %1970 = vmatpush1.xpose.msra.mxu0 0.0
        %1971 = vmatprep.subr.mxu0 0.0
        %1972 = vmatpush1.xpose.msra.mxu0 0.0
        %1973 = vmatprep.subr.mxu0 0.0
        %1974 = vmatpush1.xpose.msra.mxu0 0.0
        %1975 = vmatprep.subr.mxu0 0.0
        %1976 = vmatpush1.xpose.msra.mxu0 0.0
        %1977 = vmatprep.subr.mxu0 0.0
        %1978 = vmatpush1.xpose.msra.mxu0 0.0
        %1979 = vmatprep.subr.mxu0 0.0
        %1980 = vmatpush1.xpose.msra.mxu0 0.0
        %1981 = vmatprep.subr.mxu0 0.0
        %1982 = vmatpush1.xpose.msra.mxu0 0.0
        %1983 = vmatprep.subr.mxu0 0.0
        %1984 = vmatpush1.xpose.msra.mxu0 0.0
        %1985 = vmatprep.subr.mxu0 0.0
        %1986 = vmatpush1.xpose.msra.mxu0 0.0
        %1987 = vmatprep.subr.mxu0 0.0
        %1988 = vmatpush1.xpose.msra.mxu0 0.0
        %1989 = vmatprep.subr.mxu0 0.0
        %1990 = vmatpush1.xpose.msra.mxu0 0.0
        %1991 = vmatprep.subr.mxu0 0.0
        %1992 = vmatpush1.xpose.msra.mxu0 0.0
        %1993 = vmatprep.subr.mxu0 0.0
        %1994 = vmatpush1.xpose.msra.mxu0 0.0
        %1995 = vmatprep.subr.mxu0 0.0
        %1996 = vmatpush1.xpose.msra.mxu0 0.0
        %1997 = vmatprep.subr.mxu0 0.0
        %1998 = vmatpush1.xpose.msra.mxu0 0.0
        %1999 = vmatprep.mubr.f32.mxu0 0.0
        %v2000 = vand.u32 %v1755, 4294901760
        %v2001 = vsub.f32 %v1755, %v2000
        %2002 = vmatmul.mubr.f32.gmra.mrb[0].mxu0 %v2001
        %v2003 = vpop.f32.mrb[0].mxu0
        %v2004 = vadd.f32 %v1924, %v2003
        %v2005 = vpop.f32.mrb[0].mxu0
        %2006 = vdwg.mxu0
        %2007 = vmatprep.subr.mxu0 0.0
        %v2008 = vand.u32 %v754, 4294901760
        %2009 = vmatpush1.xpose.msra.mxu0 %v2008
        %2010 = vmatprep.subr.mxu0 0.0
        %v2011 = vand.u32 %v757, 4294901760
        %2012 = vmatpush1.xpose.msra.mxu0 %v2011
        %2013 = vmatprep.subr.mxu0 0.0
        %v2014 = vand.u32 %v760, 4294901760
        %2015 = vmatpush1.xpose.msra.mxu0 %v2014
        %2016 = vmatprep.subr.mxu0 0.0
        %v2017 = vand.u32 %v763, 4294901760
        %2018 = vmatpush1.xpose.msra.mxu0 %v2017
        %2019 = vmatprep.subr.mxu0 0.0
        %2020 = vmatpush1.xpose.msra.mxu0 0.0
        %2021 = vmatprep.subr.mxu0 0.0
        %2022 = vmatpush1.xpose.msra.mxu0 0.0
        %2023 = vmatprep.subr.mxu0 0.0
        %2024 = vmatpush1.xpose.msra.mxu0 0.0
        %2025 = vmatprep.subr.mxu0 0.0
        %2026 = vmatpush1.xpose.msra.mxu0 0.0
        %2027 = vmatprep.subr.mxu0 0.0
        %2028 = vmatpush1.xpose.msra.mxu0 0.0
        %2029 = vmatprep.subr.mxu0 0.0
        %2030 = vmatpush1.xpose.msra.mxu0 0.0
        %2031 = vmatprep.subr.mxu0 0.0
        %2032 = vmatpush1.xpose.msra.mxu0 0.0
        %2033 = vmatprep.subr.mxu0 0.0
        %2034 = vmatpush1.xpose.msra.mxu0 0.0
        %2035 = vmatprep.subr.mxu0 0.0
        %2036 = vmatpush1.xpose.msra.mxu0 0.0
        %2037 = vmatprep.subr.mxu0 0.0
        %2038 = vmatpush1.xpose.msra.mxu0 0.0
        %2039 = vmatprep.subr.mxu0 0.0
        %2040 = vmatpush1.xpose.msra.mxu0 0.0
        %2041 = vmatprep.subr.mxu0 0.0
        %2042 = vmatpush1.xpose.msra.mxu0 0.0
        %2043 = vmatprep.subr.mxu0 0.0
        %2044 = vmatpush1.xpose.msra.mxu0 0.0
        %2045 = vmatprep.subr.mxu0 0.0
        %2046 = vmatpush1.xpose.msra.mxu0 0.0
        %2047 = vmatprep.subr.mxu0 0.0
        %2048 = vmatpush1.xpose.msra.mxu0 0.0
        %2049 = vmatprep.subr.mxu0 0.0
        %2050 = vmatpush1.xpose.msra.mxu0 0.0
        %2051 = vmatprep.subr.mxu0 0.0
        %2052 = vmatpush1.xpose.msra.mxu0 0.0
        %2053 = vmatprep.subr.mxu0 0.0
        %2054 = vmatpush1.xpose.msra.mxu0 0.0
        %2055 = vmatprep.subr.mxu0 0.0
        %2056 = vmatpush1.xpose.msra.mxu0 0.0
        %2057 = vmatprep.subr.mxu0 0.0
        %2058 = vmatpush1.xpose.msra.mxu0 0.0
        %2059 = vmatprep.subr.mxu0 0.0
        %2060 = vmatpush1.xpose.msra.mxu0 0.0
        %2061 = vmatprep.subr.mxu0 0.0
        %2062 = vmatpush1.xpose.msra.mxu0 0.0
        %2063 = vmatprep.subr.mxu0 0.0
        %2064 = vmatpush1.xpose.msra.mxu0 0.0
        %2065 = vmatprep.subr.mxu0 0.0
        %2066 = vmatpush1.xpose.msra.mxu0 0.0
        %2067 = vmatprep.subr.mxu0 0.0
        %2068 = vmatpush1.xpose.msra.mxu0 0.0
        %2069 = vmatprep.subr.mxu0 0.0
        %2070 = vmatpush1.xpose.msra.mxu0 0.0
        %2071 = vmatprep.subr.mxu0 0.0
        %2072 = vmatpush1.xpose.msra.mxu0 0.0
        %2073 = vmatprep.subr.mxu0 0.0
        %2074 = vmatpush1.xpose.msra.mxu0 0.0
        %2075 = vmatprep.mubr.f32.mxu0 0.0
        %v2076 = vand.u32 %v1755, 4294901760
        %v2077 = vsub.f32 %v1755, %v2076
        %v2078 = vand.u32 %v2077, 4294901760
        %2079 = vmatmul.mubr.f32.gmra.mrb[0].mxu0 %v2078
        %v2080 = vpop.f32.mrb[0].mxu0
        %v2081 = vadd.f32 %v2004, %v2080
        %v2082 = vpop.f32.mrb[0].mxu0
        %2083 = vdwg.mxu0
        %2084 = vmatprep.subr.mxu0 0.0
        %v2085 = vand.u32 %v754, 4294901760
        %v2086 = vsub.f32 %v754, %v2085
        %v2087 = vand.u32 %v2086, 4294901760
        %2088 = vmatpush1.xpose.msra.mxu0 %v2087
        %2089 = vmatprep.subr.mxu0 0.0
        %v2090 = vand.u32 %v757, 4294901760
        %v2091 = vsub.f32 %v757, %v2090
        %v2092 = vand.u32 %v2091, 4294901760
        %2093 = vmatpush1.xpose.msra.mxu0 %v2092
        %2094 = vmatprep.subr.mxu0 0.0
        %v2095 = vand.u32 %v760, 4294901760
        %v2096 = vsub.f32 %v760, %v2095
        %v2097 = vand.u32 %v2096, 4294901760
        %2098 = vmatpush1.xpose.msra.mxu0 %v2097
        %2099 = vmatprep.subr.mxu0 0.0
        %v2100 = vand.u32 %v763, 4294901760
        %v2101 = vsub.f32 %v763, %v2100
        %v2102 = vand.u32 %v2101, 4294901760
        %2103 = vmatpush1.xpose.msra.mxu0 %v2102
        %2104 = vmatprep.subr.mxu0 0.0
        %2105 = vmatpush1.xpose.msra.mxu0 0.0
        %2106 = vmatprep.subr.mxu0 0.0
        %2107 = vmatpush1.xpose.msra.mxu0 0.0
        %2108 = vmatprep.subr.mxu0 0.0
        %2109 = vmatpush1.xpose.msra.mxu0 0.0
        %2110 = vmatprep.subr.mxu0 0.0
        %2111 = vmatpush1.xpose.msra.mxu0 0.0
        %2112 = vmatprep.subr.mxu0 0.0
        %2113 = vmatpush1.xpose.msra.mxu0 0.0
        %2114 = vmatprep.subr.mxu0 0.0
        %2115 = vmatpush1.xpose.msra.mxu0 0.0
        %2116 = vmatprep.subr.mxu0 0.0
        %2117 = vmatpush1.xpose.msra.mxu0 0.0
        %2118 = vmatprep.subr.mxu0 0.0
        %2119 = vmatpush1.xpose.msra.mxu0 0.0
        %2120 = vmatprep.subr.mxu0 0.0
        %2121 = vmatpush1.xpose.msra.mxu0 0.0
        %2122 = vmatprep.subr.mxu0 0.0
        %2123 = vmatpush1.xpose.msra.mxu0 0.0
        %2124 = vmatprep.subr.mxu0 0.0
        %2125 = vmatpush1.xpose.msra.mxu0 0.0
        %2126 = vmatprep.subr.mxu0 0.0
        %2127 = vmatpush1.xpose.msra.mxu0 0.0
        %2128 = vmatprep.subr.mxu0 0.0
        %2129 = vmatpush1.xpose.msra.mxu0 0.0
        %2130 = vmatprep.subr.mxu0 0.0
        %2131 = vmatpush1.xpose.msra.mxu0 0.0
        %2132 = vmatprep.subr.mxu0 0.0
        %2133 = vmatpush1.xpose.msra.mxu0 0.0
        %2134 = vmatprep.subr.mxu0 0.0
        %2135 = vmatpush1.xpose.msra.mxu0 0.0
        %2136 = vmatprep.subr.mxu0 0.0
        %2137 = vmatpush1.xpose.msra.mxu0 0.0
        %2138 = vmatprep.subr.mxu0 0.0
        %2139 = vmatpush1.xpose.msra.mxu0 0.0
        %2140 = vmatprep.subr.mxu0 0.0
        %2141 = vmatpush1.xpose.msra.mxu0 0.0
        %2142 = vmatprep.subr.mxu0 0.0
        %2143 = vmatpush1.xpose.msra.mxu0 0.0
        %2144 = vmatprep.subr.mxu0 0.0
        %2145 = vmatpush1.xpose.msra.mxu0 0.0
        %2146 = vmatprep.subr.mxu0 0.0
        %2147 = vmatpush1.xpose.msra.mxu0 0.0
        %2148 = vmatprep.subr.mxu0 0.0
        %2149 = vmatpush1.xpose.msra.mxu0 0.0
        %2150 = vmatprep.subr.mxu0 0.0
        %2151 = vmatpush1.xpose.msra.mxu0 0.0
        %2152 = vmatprep.subr.mxu0 0.0
        %2153 = vmatpush1.xpose.msra.mxu0 0.0
        %2154 = vmatprep.subr.mxu0 0.0
        %2155 = vmatpush1.xpose.msra.mxu0 0.0
        %2156 = vmatprep.subr.mxu0 0.0
        %2157 = vmatpush1.xpose.msra.mxu0 0.0
        %2158 = vmatprep.subr.mxu0 0.0
        %2159 = vmatpush1.xpose.msra.mxu0 0.0
        %2160 = vmatprep.mubr.f32.mxu0 0.0
        %v2161 = vand.u32 %v1755, 4294901760
        %2162 = vmatmul.mubr.f32.gmra.mrb[0].mxu0 %v2161
        %v2163 = vpop.f32.mrb[0].mxu0
        %v2164 = vadd.f32 %v2081, %v2163
        %v2165 = vpop.f32.mrb[0].mxu0
        %2166 = vdwg.mxu0
        %2167 = vmatprep.subr.mxu0 0.0
        %v2168 = vand.u32 %v754, 4294901760
        %2169 = vmatpush1.xpose.msra.mxu0 %v2168
        %2170 = vmatprep.subr.mxu0 0.0
        %v2171 = vand.u32 %v757, 4294901760
        %2172 = vmatpush1.xpose.msra.mxu0 %v2171
        %2173 = vmatprep.subr.mxu0 0.0
        %v2174 = vand.u32 %v760, 4294901760
        %2175 = vmatpush1.xpose.msra.mxu0 %v2174
        %2176 = vmatprep.subr.mxu0 0.0
        %v2177 = vand.u32 %v763, 4294901760
        %2178 = vmatpush1.xpose.msra.mxu0 %v2177
        %2179 = vmatprep.subr.mxu0 0.0
        %2180 = vmatpush1.xpose.msra.mxu0 0.0
        %2181 = vmatprep.subr.mxu0 0.0
        %2182 = vmatpush1.xpose.msra.mxu0 0.0
        %2183 = vmatprep.subr.mxu0 0.0
        %2184 = vmatpush1.xpose.msra.mxu0 0.0
        %2185 = vmatprep.subr.mxu0 0.0
        %2186 = vmatpush1.xpose.msra.mxu0 0.0
        %2187 = vmatprep.subr.mxu0 0.0
        %2188 = vmatpush1.xpose.msra.mxu0 0.0
        %2189 = vmatprep.subr.mxu0 0.0
        %2190 = vmatpush1.xpose.msra.mxu0 0.0
        %2191 = vmatprep.subr.mxu0 0.0
        %2192 = vmatpush1.xpose.msra.mxu0 0.0
        %2193 = vmatprep.subr.mxu0 0.0
        %2194 = vmatpush1.xpose.msra.mxu0 0.0
        %2195 = vmatprep.subr.mxu0 0.0
        %2196 = vmatpush1.xpose.msra.mxu0 0.0
        %2197 = vmatprep.subr.mxu0 0.0
        %2198 = vmatpush1.xpose.msra.mxu0 0.0
        %2199 = vmatprep.subr.mxu0 0.0
        %2200 = vmatpush1.xpose.msra.mxu0 0.0
        %2201 = vmatprep.subr.mxu0 0.0
        %2202 = vmatpush1.xpose.msra.mxu0 0.0
        %2203 = vmatprep.subr.mxu0 0.0
        %2204 = vmatpush1.xpose.msra.mxu0 0.0
        %2205 = vmatprep.subr.mxu0 0.0
        %2206 = vmatpush1.xpose.msra.mxu0 0.0
        %2207 = vmatprep.subr.mxu0 0.0
        %2208 = vmatpush1.xpose.msra.mxu0 0.0
        %2209 = vmatprep.subr.mxu0 0.0
        %2210 = vmatpush1.xpose.msra.mxu0 0.0
        %2211 = vmatprep.subr.mxu0 0.0
        %2212 = vmatpush1.xpose.msra.mxu0 0.0
        %2213 = vmatprep.subr.mxu0 0.0
        %2214 = vmatpush1.xpose.msra.mxu0 0.0
        %2215 = vmatprep.subr.mxu0 0.0
        %2216 = vmatpush1.xpose.msra.mxu0 0.0
        %2217 = vmatprep.subr.mxu0 0.0
        %2218 = vmatpush1.xpose.msra.mxu0 0.0
        %2219 = vmatprep.subr.mxu0 0.0
        %2220 = vmatpush1.xpose.msra.mxu0 0.0
        %2221 = vmatprep.subr.mxu0 0.0
        %2222 = vmatpush1.xpose.msra.mxu0 0.0
        %2223 = vmatprep.subr.mxu0 0.0
        %2224 = vmatpush1.xpose.msra.mxu0 0.0
        %2225 = vmatprep.subr.mxu0 0.0
        %2226 = vmatpush1.xpose.msra.mxu0 0.0
        %2227 = vmatprep.subr.mxu0 0.0
        %2228 = vmatpush1.xpose.msra.mxu0 0.0
        %2229 = vmatprep.subr.mxu0 0.0
        %2230 = vmatpush1.xpose.msra.mxu0 0.0
        %2231 = vmatprep.subr.mxu0 0.0
        %2232 = vmatpush1.xpose.msra.mxu0 0.0
        %2233 = vmatprep.subr.mxu0 0.0
        %2234 = vmatpush1.xpose.msra.mxu0 0.0
        %2235 = vmatprep.mubr.f32.mxu0 0.0
        %v2236 = vand.u32 %v1755, 4294901760
        %2237 = vmatmul.mubr.f32.gmra.mrb[0].mxu0 %v2236
        %v2238 = vpop.f32.mrb[0].mxu0
        %v2239 = vadd.f32 %v2164, %v2238
        %v2240 = vpop.f32.mrb[0].mxu0
        %2241 = vdwg.mxu0
        %v2242 = vld [vmem:[%s242] sm:$0x1]
        %v2243 = vmul.f32 %v2239, %v2242
        %v2244 = vlaneseq
        %v2245 = vshrl.u32 %v2244, 7
        %v2246 = vsub.s32 0, %v2245
        %v2247 = vrot.slane %v2243, %v2246
        %v2248 = vmul.f32 %v1254, %v2247
        %v2249 = vld [vmem:[%s245] sm:$0x1]
        %v2251 = vlaneseq
        %v2252 = vshrl.u32 %v2251, 7
        %v2253 = vsub.s32 0, %v2252
        %v2254 = vrot.slane %v2249, %v2253
        %v2256 = vadd.f32 %v2248, %v2254
        %2257 = vst.msk [vmem:[%s232] sm:$0xff] %vm247, %v2256
        %s2258 = sand.u32 %s141, 1
        %s2259 = scalar_lea.sflag [#allocation3], %s2258
        %s2260 = sand.u32 %s141, 1
        %s2261 = smul.addr %s2260, 8
        %s2262 = scalar_lea.vmem [#allocation2], %s2261
        // Predicated region
        $region37: #{tpu_custom_call.1} parent=35 // pred_check
          %p2263 = pneg %p151
        $region38: #{tpu_custom_call.1} parent=35 // pred_check_branch
          %2265 = sbr.rel (%p2263) target = $region40
        $region39: #{tpu_custom_call.1} parent=35 // pred_region
          %s2267 = ssub.s32 128, 128
          %2268 = vsyncadd %s2259, %s2267
          %s2269 = sadd.s32 %s23, %s22
          %s2270 = smul.addr %s2269, 128
          %s2271 = scalar_lea.hbm %s4, %s2270
          %s2273 = sshll.u32 %s2262, 4
          %s2274 = int_to_ptr.vmem [resolvable:$true] %s2273
          %2276 = dma.vmem_to_hbm [thread:$0]  %s2274, 128, %s2271, %s2259
        $region40: #{tpu_custom_call.1} parent=35 // pred_fallthru
          _
      $region36: #{tpu_custom_call.1} parent=5 // pred_fallthru
        _
      %p2277 = scmp.le.s32.totalorder 2, %s13
      // Predicated region
      $region41: #{tpu_custom_call.1} parent=5 // pred_check
        %p2278 = pneg %p2277
      $region42: #{tpu_custom_call.1} parent=5 // pred_check_branch
        %2280 = sbr.rel (%p2278) target = $region44
      $region43: #{tpu_custom_call.1} parent=5 // pred_region
        %s2281 = ssub.s32 %s13, 2
        // Predicated region
        $region45: #{tpu_custom_call.1} parent=43 // pred_check
          %p2282 = pneg %p157
        $region46: #{tpu_custom_call.1} parent=43 // pred_check_branch
          %2284 = sbr.rel (%p2282) target = $region48
        $region47: #{tpu_custom_call.1} parent=43 // pred_region
          %s2285 = sand.u32 %s142, 1
          %s2286 = scalar_lea.sflag [#allocation3], %s2285
          %s2287 = sand.u32 %s142, 1
          %s2288 = smul.addr %s2287, 8
          %s2289 = scalar_lea.vmem [#allocation2], %s2288
          %2290 = dma.done %s2286, 128
        $region48: #{tpu_custom_call.1} parent=43 // pred_fallthru
          _
      $region44: #{tpu_custom_call.1} parent=5 // pred_fallthru
        _
    $region6: #{tpu_custom_call.1} parent=1 // loop_footer
      %s17 = sadd.s32 1, %s13
    $region7: #{tpu_custom_call.1} parent=1 // loop_footer_branch
      %12 = sbr.rel target = $region3
    $region8: #{tpu_custom_call.1} parent=1 // loop_exit
      _
    %2291 = vsyncpa [#allocation3], 1
    %s2292 = scalar_lea.sflag [#allocation3], 1
    %2293 = vsyncpa %s2292, 1

</llo_original>
